<compile_context>
chip_gen: v5e
topology: v5e:2x2
jax: 0.10.0
libtpu: 0.0.40
codegen_flags: <defaults>
</compile_context>

<pallas_src>
import functools

import jax
import jax.numpy as jnp
from jax import lax
from jax.experimental import pallas as pl
from jax.experimental.pallas import tpu as pltpu


def _lstm_kernel(x_ref, wih0_ref, b0_ref, wfused_ref, b1_ref, whh1_ref,
                 post_a_ref, post_b_ref, gamma_ref, beta_ref, wfc_ref, bfc_ref,
                 out_ref, xw_ref, *, T):
    TB = x_ref.shape[0]
    B = TB // T
    H = whh1_ref.shape[0]
    G = 4 * H

    # ---- one-shot layer-0 input projection (off critical path), bias folded once, staged in VMEM ----
    xw_ref[...] = (jnp.dot(x_ref[...], wih0_ref[...], preferred_element_type=jnp.float32)
                   + b0_ref[...])                                   # (T*B, 4H) f32, pre-scaled lanes

    wfused = wfused_ref[...]                                        # (H, 8H) bf16 : [whh0 | wih1]
    whh1 = whh1_ref[...]                                            # (H, 4H) bf16
    # hoisted broadcasts (JAX does not CSE broadcast_in_dim inside the unrolled loop)
    b1 = jnp.broadcast_to(b1_ref[...], (B, G))
    post_a = jnp.broadcast_to(post_a_ref[...], (B, G))
    post_b = jnp.broadcast_to(post_b_ref[...], (B, G))

    def gates_to_hc(pre, c):
        # `pre` already has i/f/o gate lanes pre-scaled by 0.5 (folded into weights/biases), so a
        # single tanh gives tanh on g lanes and 2*sigmoid-1 on i/f/o lanes; one affine recovers them.
        t = jnp.tanh(pre)                                           # 1 EUP push per cell
        act = t * post_a + post_b                                   # i/f/o -> sigmoid, g -> tanh
        # gate order (i, f, g, o): the i slice (offset 0) is free; f/g/o are the 3-move floor.
        c_new = act[:, H:2 * H] * c + act[:, 0:H] * act[:, 2 * H:3 * H]
        h_new = act[:, 3 * H:4 * H] * jnp.tanh(c_new)
        return h_new, c_new

    zeros_h = jnp.zeros((B, H), jnp.float32)
    zeros_g = jnp.zeros((B, G), jnp.float32)

    if T <= 16:
        # static full unroll: lets the scheduler overlap adjacent steps (hproj1 off critical path)
        c0, c1, h1 = zeros_h, zeros_h, zeros_h
        hproj0, hproj1 = zeros_g, zeros_g
        for t in range(T):
            # layer 0
            h0, c0 = gates_to_hc(xw_ref[pl.ds(t * B, B), :] + hproj0, c0)
            # ONE wide matmul on the critical path: h0 @ [whh0 | wih1]
            fused = jnp.dot(h0.astype(jnp.bfloat16), wfused,
                            preferred_element_type=jnp.float32)     # (B, 8H)
            hproj0 = fused[:, 0:G]
            # layer 1
            h1, c1 = gates_to_hc(fused[:, G:2 * G] + hproj1 + b1, c1)
            if t + 1 < T:   # only needed next step -> off the critical path
                hproj1 = jnp.dot(h1.astype(jnp.bfloat16), whh1,
                                 preferred_element_type=jnp.float32)
    else:
        # large-T fallback: bounded vreg live ranges; xw read from VMEM per step
        def body(t, carry):
            c0, c1, h1, hproj0, hproj1 = carry
            row = pl.multiple_of(t * B, B)
            h0, c0 = gates_to_hc(xw_ref[pl.ds(row, B), :] + hproj0, c0)
            fused = jnp.dot(h0.astype(jnp.bfloat16), wfused,
                            preferred_element_type=jnp.float32)
            hproj0 = fused[:, 0:G]
            h1, c1 = gates_to_hc(fused[:, G:2 * G] + hproj1 + b1, c1)
            hproj1 = jnp.dot(h1.astype(jnp.bfloat16), whh1,
                             preferred_element_type=jnp.float32)
            return (c0, c1, h1, hproj0, hproj1)

        c0, c1, h1, hproj0, hproj1 = lax.fori_loop(
            0, T, body, (zeros_h, zeros_h, zeros_h, zeros_g, zeros_g), unroll=2)

    # ---- LayerNorm over hidden dim (eps = 1e-5), one-pass stats with clamped variance ----
    mean = jnp.mean(h1, axis=-1, keepdims=True)
    ex2 = jnp.mean(h1 * h1, axis=-1, keepdims=True)
    var = jnp.maximum(ex2 - mean * mean, 0.0)
    ln = (h1 - mean) * lax.rsqrt(var + 1e-5)
    ln = ln * gamma_ref[...] + beta_ref[...]

    # Dropout(0.3) is identity in eval mode.
    # TODO(synk): training-mode dropout (pltpu.prng_random_bits mask + 1/(1-p) scale) not implemented.

    # ---- final Linear into a lane-dense (B_pad, 128) output; wrapper trims to (B, 2) ----
    out_ref[...] = (jnp.dot(ln, wfc_ref[...], preferred_element_type=jnp.float32)
                    + bfc_ref[...])


def pack_params(params):
    """One-time weight repacking (hoisted off the per-call path).

    Folds the 0.5 sigmoid pre-scale into the i/f/o gate columns, concatenates [whh0|wih1] into
    the fused recurrence weight, casts the recurrence-path MXU operands to bf16, and zero-pads
    the FC weight/bias to 128 lanes.
    """
    H = params["whh0"].shape[0]
    N_pad = 128
    f32 = jnp.float32
    # gate order (i, f, g, o): scale i/f/o columns by 0.5, g columns by 1.0
    col_scale = jnp.concatenate(
        [jnp.full((2 * H,), 0.5, f32), jnp.ones((H,), f32), jnp.full((H,), 0.5, f32)])

    def sc(w):
        return (w * col_scale).astype(f32)

    packed = {
        # f32 on the one-shot input projection (off critical path -> better PyTorch parity)
        "wih0": sc(params["wih0"]),                                             # (I, 4H) f32
        "b0":   sc(params["b0"]),                                               # (1, 4H) f32
        # bf16 on the recurrence critical path (single-pass MXU); keep RHS width <= 256 cols
        "wfused": jnp.concatenate([sc(params["whh0"]), sc(params["wih1"])],
                                  axis=1).astype(jnp.bfloat16),                 # (H, 8H)
        "b1":   sc(params["b1"]),                                               # (1, 4H) f32
        "whh1": sc(params["whh1"]).astype(jnp.bfloat16),                        # (H, 4H)
        # affine constants that turn the single tanh back into sigmoid on i/f/o lanes
        "post_a": jnp.concatenate([jnp.full((1, 2 * H), 0.5, f32), jnp.ones((1, H), f32),
                                   jnp.full((1, H), 0.5, f32)], axis=1),
        "post_b": jnp.concatenate([jnp.full((1, 2 * H), 0.5, f32), jnp.zeros((1, H), f32),
                                   jnp.full((1, H), 0.5, f32)], axis=1),
        "gamma": params["gamma"].astype(f32),
        "beta":  params["beta"].astype(f32),
        "wfc":   jnp.zeros((H, N_pad), f32).at[:, :2].set(params["wfc"]),
        "bfc":   jnp.zeros((1, N_pad), f32).at[:, :2].set(params["bfc"]),
    }
    return packed


@jax.jit
def regularized_lstm_forward(x, packed):
    """x: (B, T, I) float32, batch_first (matching PyTorch). Returns (B, 2) float32."""
    B, T, I = x.shape
    H = packed["whh1"].shape[0]
    B_pad = max(8, ((B + 7) // 8) * 8)      # pad batch to f32 sublane height
    N_pad = packed["wfc"].shape[1]          # lane-dense output width (128)

    # Mandatory per-call work only: batch-pad + time-major in one copy, then flatten (contiguous).
    x_tm = jnp.zeros((T, B_pad, I), jnp.float32).at[:, :B, :].set(jnp.swapaxes(x, 0, 1))
    x_flat = x_tm.reshape(T * B_pad, I)

    vmem = pl.BlockSpec(memory_space=pltpu.MemorySpace.VMEM)
    out_pad = pl.pallas_call(
        functools.partial(_lstm_kernel, T=T),
        out_shape=jax.ShapeDtypeStruct((B_pad, N_pad), jnp.float32),
        in_specs=[vmem] * 12,
        out_specs=vmem,
        scratch_shapes=[pltpu.VMEM((T * B_pad, 4 * H), jnp.float32)],
    )(x_flat, packed["wih0"], packed["b0"], packed["wfused"], packed["b1"],
      packed["whh1"], packed["post_a"], packed["post_b"],
      packed["gamma"], packed["beta"], packed["wfc"], packed["bfc"])

    # Padded batch rows carry garbage by construction; never consume out_pad unsliced.
    return out_pad[:B, :2]


def init_params(key, input_size, hidden_size):
    H = hidden_size
    I = input_size
    ks = jax.random.split(key, 10)
    bound = 1.0 / jnp.sqrt(H)

    def u(k, shape):
        return jax.random.uniform(k, shape, jnp.float32, -bound, bound)

    # Weights stored pre-transposed: x @ W_ih.T  ->  x @ wih  with wih = (in, 4H); gate order (i,f,g,o)
    params = {
        "wih0": u(ks[0], (I, 4 * H)),
        "whh0": u(ks[1], (H, 4 * H)),
        "b0":   u(ks[2], (1, 4 * H)) + u(ks[3], (1, 4 * H)),   # b_ih + b_hh
        "wih1": u(ks[4], (H, 4 * H)),
        "whh1": u(ks[5], (H, 4 * H)),
        "b1":   u(ks[6], (1, 4 * H)) + u(ks[7], (1, 4 * H)),
        "gamma": jnp.ones((1, H), jnp.float32),
        "beta":  jnp.zeros((1, H), jnp.float32),
        "wfc":  u(ks[8], (H, 2)),
        "bfc":  u(ks[9], (1, 2)),
    }
    return params


if __name__ == "__main__":
    B, T, I, H = 2, 8, 4, 32   # small shapes: batch=2, seq=8, input_size=4, hidden=32
    key = jax.random.PRNGKey(0)
    kx, kp = jax.random.split(key)
    x = jax.random.normal(kx, (B, T, I), jnp.float32)

    params = init_params(kp, I, H)
    packed = pack_params(params)                        # one-time repacking, off the call path
    packed = jax.tree_util.tree_map(jax.block_until_ready, packed)

    out = regularized_lstm_forward(x, packed)
    out = jax.block_until_ready(out)
    assert out.shape == (B, 2) and out.dtype == jnp.float32
    assert bool(jnp.all(jnp.isfinite(out)))
    print("KERNEL_OK")
</pallas_src>

<mosaic_0001>
module attributes {stable_mosaic.version = 11 : i64} {
  func.func @_lstm_kernel(%arg0: memref<64x4xf32, #tpu.memory_space<vmem>>, %arg1: memref<4x128xf32, #tpu.memory_space<vmem>>, %arg2: memref<1x128xf32, #tpu.memory_space<vmem>>, %arg3: memref<32x256xbf16, #tpu.memory_space<vmem>>, %arg4: memref<1x128xf32, #tpu.memory_space<vmem>>, %arg5: memref<32x128xbf16, #tpu.memory_space<vmem>>, %arg6: memref<1x128xf32, #tpu.memory_space<vmem>>, %arg7: memref<1x128xf32, #tpu.memory_space<vmem>>, %arg8: memref<1x32xf32, #tpu.memory_space<vmem>>, %arg9: memref<1x32xf32, #tpu.memory_space<vmem>>, %arg10: memref<32x128xf32, #tpu.memory_space<vmem>>, %arg11: memref<1x128xf32, #tpu.memory_space<vmem>>, %arg12: memref<8x128xf32, #tpu.memory_space<vmem>>, %arg13: memref<64x128xf32, #tpu.memory_space<vmem>>) attributes {dimension_semantics = [], scalar_prefetch = 0 : i64, scratch_operands = 1 : i64, tpu.core_type = #tpu.core_type<tc>} {
    %c0 = arith.constant 0 : index
    %c0_0 = arith.constant 0 : index
    %0 = vector.load %arg0[%c0, %c0_0] : memref<64x4xf32, #tpu.memory_space<vmem>>, vector<64x4xf32>
    %c0_1 = arith.constant 0 : index
    %c0_2 = arith.constant 0 : index
    %1 = vector.load %arg1[%c0_1, %c0_2] : memref<4x128xf32, #tpu.memory_space<vmem>>, vector<4x128xf32>
    %cst = arith.constant dense<0.000000e+00> : vector<64x128xf32>
    %2 = tpu.matmul %0, %1, %cst {dimension_numbers = #tpu.dot_dimension_numbers<[1], [0], [0], [1], [0, 0, 1, 1], [], []>} : vector<64x4xf32>, vector<4x128xf32>, vector<64x128xf32> -> vector<64x128xf32>
    %c0_3 = arith.constant 0 : index
    %c0_4 = arith.constant 0 : index
    %3 = vector.load %arg2[%c0_3, %c0_4] : memref<1x128xf32, #tpu.memory_space<vmem>>, vector<1x128xf32>
    %4 = vector.broadcast %3 : vector<1x128xf32> to vector<64x128xf32>
    %5 = arith.addf %2, %4 : vector<64x128xf32>
    %c0_5 = arith.constant 0 : index
    %c0_6 = arith.constant 0 : index
    %6 = vector.load %arg13[%c0_5, %c0_6] : memref<64x128xf32, #tpu.memory_space<vmem>>, vector<64x128xf32>
    tpu.vector_store %arg13[%c0_5, %c0_6], %5 {strides = array<i32>} : memref<64x128xf32, #tpu.memory_space<vmem>>, vector<64x128xf32>,
    %c0_7 = arith.constant 0 : index
    %c0_8 = arith.constant 0 : index
    %7 = vector.load %arg3[%c0_7, %c0_8] : memref<32x256xbf16, #tpu.memory_space<vmem>>, vector<32x256xbf16>
    %c0_9 = arith.constant 0 : index
    %c0_10 = arith.constant 0 : index
    %8 = vector.load %arg5[%c0_9, %c0_10] : memref<32x128xbf16, #tpu.memory_space<vmem>>, vector<32x128xbf16>
    %c0_11 = arith.constant 0 : index
    %c0_12 = arith.constant 0 : index
    %9 = vector.load %arg4[%c0_11, %c0_12] : memref<1x128xf32, #tpu.memory_space<vmem>>, vector<1x128xf32>
    %10 = vector.shape_cast %9 : vector<1x128xf32> to vector<1x128xf32>
    %11 = vector.broadcast %10 : vector<1x128xf32> to vector<8x128xf32>
    %c0_13 = arith.constant 0 : index
    %c0_14 = arith.constant 0 : index
    %12 = vector.load %arg6[%c0_13, %c0_14] : memref<1x128xf32, #tpu.memory_space<vmem>>, vector<1x128xf32>
    %13 = vector.shape_cast %12 : vector<1x128xf32> to vector<1x128xf32>
    %14 = vector.broadcast %13 : vector<1x128xf32> to vector<8x128xf32>
    %c0_15 = arith.constant 0 : index
    %c0_16 = arith.constant 0 : index
    %15 = vector.load %arg7[%c0_15, %c0_16] : memref<1x128xf32, #tpu.memory_space<vmem>>, vector<1x128xf32>
    %16 = vector.shape_cast %15 : vector<1x128xf32> to vector<1x128xf32>
    %17 = vector.broadcast %16 : vector<1x128xf32> to vector<8x128xf32>
    %cst_17 = arith.constant 0.000000e+00 : f32
    %18 = vector.broadcast %cst_17 : f32 to vector<8x32xf32>
    %cst_18 = arith.constant 0.000000e+00 : f32
    %19 = vector.broadcast %cst_18 : f32 to vector<8x128xf32>
    %c0_19 = arith.constant 0 : index
    %c0_20 = arith.constant 0 : index
    %20 = vector.load %arg13[%c0_19, %c0_20] : memref<64x128xf32, #tpu.memory_space<vmem>>, vector<8x128xf32>
    %21 = arith.addf %20, %19 : vector<8x128xf32>
    %22 = math.tanh %21 : vector<8x128xf32>
    %23 = arith.mulf %22, %14 : vector<8x128xf32>
    %24 = arith.addf %23, %17 : vector<8x128xf32>
    %25 = vector.extract_strided_slice %24 {offsets = [0, 32], sizes = [8, 32], strides = [1, 1]} : vector<8x128xf32> to vector<8x32xf32>
    %26 = arith.mulf %25, %18 : vector<8x32xf32>
    %27 = vector.extract_strided_slice %24 {offsets = [0, 0], sizes = [8, 32], strides = [1, 1]} : vector<8x128xf32> to vector<8x32xf32>
    %28 = vector.extract_strided_slice %24 {offsets = [0, 64], sizes = [8, 32], strides = [1, 1]} : vector<8x128xf32> to vector<8x32xf32>
    %29 = arith.mulf %27, %28 : vector<8x32xf32>
    %30 = arith.addf %26, %29 : vector<8x32xf32>
    %31 = vector.extract_strided_slice %24 {offsets = [0, 96], sizes = [8, 32], strides = [1, 1]} : vector<8x128xf32> to vector<8x32xf32>
    %32 = math.tanh %30 : vector<8x32xf32>
    %33 = arith.mulf %31, %32 : vector<8x32xf32>
    %34 = arith.truncf %33 : vector<8x32xf32> to vector<8x32xbf16>
    %cst_21 = arith.constant dense<0.000000e+00> : vector<8x256xf32>
    %35 = tpu.matmul %34, %7, %cst_21 {dimension_numbers = #tpu.dot_dimension_numbers<[1], [0], [0], [1], [0, 0, 1, 1], [], []>} : vector<8x32xbf16>, vector<32x256xbf16>, vector<8x256xf32> -> vector<8x256xf32>
    %36 = vector.extract_strided_slice %35 {offsets = [0, 0], sizes = [8, 128], strides = [1, 1]} : vector<8x256xf32> to vector<8x128xf32>
    %37 = vector.extract_strided_slice %35 {offsets = [0, 128], sizes = [8, 128], strides = [1, 1]} : vector<8x256xf32> to vector<8x128xf32>
    %38 = arith.addf %37, %19 : vector<8x128xf32>
    %39 = arith.addf %38, %11 : vector<8x128xf32>
    %40 = math.tanh %39 : vector<8x128xf32>
    %41 = arith.mulf %40, %14 : vector<8x128xf32>
    %42 = arith.addf %41, %17 : vector<8x128xf32>
    %43 = vector.extract_strided_slice %42 {offsets = [0, 32], sizes = [8, 32], strides = [1, 1]} : vector<8x128xf32> to vector<8x32xf32>
    %44 = arith.mulf %43, %18 : vector<8x32xf32>
    %45 = vector.extract_strided_slice %42 {offsets = [0, 0], sizes = [8, 32], strides = [1, 1]} : vector<8x128xf32> to vector<8x32xf32>
    %46 = vector.extract_strided_slice %42 {offsets = [0, 64], sizes = [8, 32], strides = [1, 1]} : vector<8x128xf32> to vector<8x32xf32>
    %47 = arith.mulf %45, %46 : vector<8x32xf32>
    %48 = arith.addf %44, %47 : vector<8x32xf32>
    %49 = vector.extract_strided_slice %42 {offsets = [0, 96], sizes = [8, 32], strides = [1, 1]} : vector<8x128xf32> to vector<8x32xf32>
    %50 = math.tanh %48 : vector<8x32xf32>
    %51 = arith.mulf %49, %50 : vector<8x32xf32>
    %52 = arith.truncf %51 : vector<8x32xf32> to vector<8x32xbf16>
    %cst_22 = arith.constant dense<0.000000e+00> : vector<8x128xf32>
    %53 = tpu.matmul %52, %8, %cst_22 {dimension_numbers = #tpu.dot_dimension_numbers<[1], [0], [0], [1], [0, 0, 1, 1], [], []>} : vector<8x32xbf16>, vector<32x128xbf16>, vector<8x128xf32> -> vector<8x128xf32>
    %c8 = arith.constant 8 : index
    %c0_23 = arith.constant 0 : index
    %54 = vector.load %arg13[%c8, %c0_23] : memref<64x128xf32, #tpu.memory_space<vmem>>, vector<8x128xf32>
    %55 = arith.addf %54, %36 : vector<8x128xf32>
    %56 = math.tanh %55 : vector<8x128xf32>
    %57 = arith.mulf %56, %14 : vector<8x128xf32>
    %58 = arith.addf %57, %17 : vector<8x128xf32>
    %59 = vector.extract_strided_slice %58 {offsets = [0, 32], sizes = [8, 32], strides = [1, 1]} : vector<8x128xf32> to vector<8x32xf32>
    %60 = arith.mulf %59, %30 : vector<8x32xf32>
    %61 = vector.extract_strided_slice %58 {offsets = [0, 0], sizes = [8, 32], strides = [1, 1]} : vector<8x128xf32> to vector<8x32xf32>
    %62 = vector.extract_strided_slice %58 {offsets = [0, 64], sizes = [8, 32], strides = [1, 1]} : vector<8x128xf32> to vector<8x32xf32>
    %63 = arith.mulf %61, %62 : vector<8x32xf32>
    %64 = arith.addf %60, %63 : vector<8x32xf32>
    %65 = vector.extract_strided_slice %58 {offsets = [0, 96], sizes = [8, 32], strides = [1, 1]} : vector<8x128xf32> to vector<8x32xf32>
    %66 = math.tanh %64 : vector<8x32xf32>
    %67 = arith.mulf %65, %66 : vector<8x32xf32>
    %68 = arith.truncf %67 : vector<8x32xf32> to vector<8x32xbf16>
    %cst_24 = arith.constant dense<0.000000e+00> : vector<8x256xf32>
    %69 = tpu.matmul %68, %7, %cst_24 {dimension_numbers = #tpu.dot_dimension_numbers<[1], [0], [0], [1], [0, 0, 1, 1], [], []>} : vector<8x32xbf16>, vector<32x256xbf16>, vector<8x256xf32> -> vector<8x256xf32>
    %70 = vector.extract_strided_slice %69 {offsets = [0, 0], sizes = [8, 128], strides = [1, 1]} : vector<8x256xf32> to vector<8x128xf32>
    %71 = vector.extract_strided_slice %69 {offsets = [0, 128], sizes = [8, 128], strides = [1, 1]} : vector<8x256xf32> to vector<8x128xf32>
    %72 = arith.addf %71, %53 : vector<8x128xf32>
    %73 = arith.addf %72, %11 : vector<8x128xf32>
    %74 = math.tanh %73 : vector<8x128xf32>
    %75 = arith.mulf %74, %14 : vector<8x128xf32>
    %76 = arith.addf %75, %17 : vector<8x128xf32>
    %77 = vector.extract_strided_slice %76 {offsets = [0, 32], sizes = [8, 32], strides = [1, 1]} : vector<8x128xf32> to vector<8x32xf32>
    %78 = arith.mulf %77, %48 : vector<8x32xf32>
    %79 = vector.extract_strided_slice %76 {offsets = [0, 0], sizes = [8, 32], strides = [1, 1]} : vector<8x128xf32> to vector<8x32xf32>
    %80 = vector.extract_strided_slice %76 {offsets = [0, 64], sizes = [8, 32], strides = [1, 1]} : vector<8x128xf32> to vector<8x32xf32>
    %81 = arith.mulf %79, %80 : vector<8x32xf32>
    %82 = arith.addf %78, %81 : vector<8x32xf32>
    %83 = vector.extract_strided_slice %76 {offsets = [0, 96], sizes = [8, 32], strides = [1, 1]} : vector<8x128xf32> to vector<8x32xf32>
    %84 = math.tanh %82 : vector<8x32xf32>
    %85 = arith.mulf %83, %84 : vector<8x32xf32>
    %86 = arith.truncf %85 : vector<8x32xf32> to vector<8x32xbf16>
    %cst_25 = arith.constant dense<0.000000e+00> : vector<8x128xf32>
    %87 = tpu.matmul %86, %8, %cst_25 {dimension_numbers = #tpu.dot_dimension_numbers<[1], [0], [0], [1], [0, 0, 1, 1], [], []>} : vector<8x32xbf16>, vector<32x128xbf16>, vector<8x128xf32> -> vector<8x128xf32>
    %c16 = arith.constant 16 : index
    %c0_26 = arith.constant 0 : index
    %88 = vector.load %arg13[%c16, %c0_26] : memref<64x128xf32, #tpu.memory_space<vmem>>, vector<8x128xf32>
    %89 = arith.addf %88, %70 : vector<8x128xf32>
    %90 = math.tanh %89 : vector<8x128xf32>
    %91 = arith.mulf %90, %14 : vector<8x128xf32>
    %92 = arith.addf %91, %17 : vector<8x128xf32>
    %93 = vector.extract_strided_slice %92 {offsets = [0, 32], sizes = [8, 32], strides = [1, 1]} : vector<8x128xf32> to vector<8x32xf32>
    %94 = arith.mulf %93, %64 : vector<8x32xf32>
    %95 = vector.extract_strided_slice %92 {offsets = [0, 0], sizes = [8, 32], strides = [1, 1]} : vector<8x128xf32> to vector<8x32xf32>
    %96 = vector.extract_strided_slice %92 {offsets = [0, 64], sizes = [8, 32], strides = [1, 1]} : vector<8x128xf32> to vector<8x32xf32>
    %97 = arith.mulf %95, %96 : vector<8x32xf32>
    %98 = arith.addf %94, %97 : vector<8x32xf32>
    %99 = vector.extract_strided_slice %92 {offsets = [0, 96], sizes = [8, 32], strides = [1, 1]} : vector<8x128xf32> to vector<8x32xf32>
    %100 = math.tanh %98 : vector<8x32xf32>
    %101 = arith.mulf %99, %100 : vector<8x32xf32>
    %102 = arith.truncf %101 : vector<8x32xf32> to vector<8x32xbf16>
    %cst_27 = arith.constant dense<0.000000e+00> : vector<8x256xf32>
    %103 = tpu.matmul %102, %7, %cst_27 {dimension_numbers = #tpu.dot_dimension_numbers<[1], [0], [0], [1], [0, 0, 1, 1], [], []>} : vector<8x32xbf16>, vector<32x256xbf16>, vector<8x256xf32> -> vector<8x256xf32>
    %104 = vector.extract_strided_slice %103 {offsets = [0, 0], sizes = [8, 128], strides = [1, 1]} : vector<8x256xf32> to vector<8x128xf32>
    %105 = vector.extract_strided_slice %103 {offsets = [0, 128], sizes = [8, 128], strides = [1, 1]} : vector<8x256xf32> to vector<8x128xf32>
    %106 = arith.addf %105, %87 : vector<8x128xf32>
    %107 = arith.addf %106, %11 : vector<8x128xf32>
    %108 = math.tanh %107 : vector<8x128xf32>
    %109 = arith.mulf %108, %14 : vector<8x128xf32>
    %110 = arith.addf %109, %17 : vector<8x128xf32>
    %111 = vector.extract_strided_slice %110 {offsets = [0, 32], sizes = [8, 32], strides = [1, 1]} : vector<8x128xf32> to vector<8x32xf32>
    %112 = arith.mulf %111, %82 : vector<8x32xf32>
    %113 = vector.extract_strided_slice %110 {offsets = [0, 0], sizes = [8, 32], strides = [1, 1]} : vector<8x128xf32> to vector<8x32xf32>
    %114 = vector.extract_strided_slice %110 {offsets = [0, 64], sizes = [8, 32], strides = [1, 1]} : vector<8x128xf32> to vector<8x32xf32>
    %115 = arith.mulf %113, %114 : vector<8x32xf32>
    %116 = arith.addf %112, %115 : vector<8x32xf32>
    %117 = vector.extract_strided_slice %110 {offsets = [0, 96], sizes = [8, 32], strides = [1, 1]} : vector<8x128xf32> to vector<8x32xf32>
    %118 = math.tanh %116 : vector<8x32xf32>
    %119 = arith.mulf %117, %118 : vector<8x32xf32>
    %120 = arith.truncf %119 : vector<8x32xf32> to vector<8x32xbf16>
    %cst_28 = arith.constant dense<0.000000e+00> : vector<8x128xf32>
    %121 = tpu.matmul %120, %8, %cst_28 {dimension_numbers = #tpu.dot_dimension_numbers<[1], [0], [0], [1], [0, 0, 1, 1], [], []>} : vector<8x32xbf16>, vector<32x128xbf16>, vector<8x128xf32> -> vector<8x128xf32>
    %c24 = arith.constant 24 : index
    %c0_29 = arith.constant 0 : index
    %122 = vector.load %arg13[%c24, %c0_29] : memref<64x128xf32, #tpu.memory_space<vmem>>, vector<8x128xf32>
    %123 = arith.addf %122, %104 : vector<8x128xf32>
    %124 = math.tanh %123 : vector<8x128xf32>
    %125 = arith.mulf %124, %14 : vector<8x128xf32>
    %126 = arith.addf %125, %17 : vector<8x128xf32>
    %127 = vector.extract_strided_slice %126 {offsets = [0, 32], sizes = [8, 32], strides = [1, 1]} : vector<8x128xf32> to vector<8x32xf32>
    %128 = arith.mulf %127, %98 : vector<8x32xf32>
    %129 = vector.extract_strided_slice %126 {offsets = [0, 0], sizes = [8, 32], strides = [1, 1]} : vector<8x128xf32> to vector<8x32xf32>
    %130 = vector.extract_strided_slice %126 {offsets = [0, 64], sizes = [8, 32], strides = [1, 1]} : vector<8x128xf32> to vector<8x32xf32>
    %131 = arith.mulf %129, %130 : vector<8x32xf32>
    %132 = arith.addf %128, %131 : vector<8x32xf32>
    %133 = vector.extract_strided_slice %126 {offsets = [0, 96], sizes = [8, 32], strides = [1, 1]} : vector<8x128xf32> to vector<8x32xf32>
    %134 = math.tanh %132 : vector<8x32xf32>
    %135 = arith.mulf %133, %134 : vector<8x32xf32>
    %136 = arith.truncf %135 : vector<8x32xf32> to vector<8x32xbf16>
    %cst_30 = arith.constant dense<0.000000e+00> : vector<8x256xf32>
    %137 = tpu.matmul %136, %7, %cst_30 {dimension_numbers = #tpu.dot_dimension_numbers<[1], [0], [0], [1], [0, 0, 1, 1], [], []>} : vector<8x32xbf16>, vector<32x256xbf16>, vector<8x256xf32> -> vector<8x256xf32>
    %138 = vector.extract_strided_slice %137 {offsets = [0, 0], sizes = [8, 128], strides = [1, 1]} : vector<8x256xf32> to vector<8x128xf32>
    %139 = vector.extract_strided_slice %137 {offsets = [0, 128], sizes = [8, 128], strides = [1, 1]} : vector<8x256xf32> to vector<8x128xf32>
    %140 = arith.addf %139, %121 : vector<8x128xf32>
    %141 = arith.addf %140, %11 : vector<8x128xf32>
    %142 = math.tanh %141 : vector<8x128xf32>
    %143 = arith.mulf %142, %14 : vector<8x128xf32>
    %144 = arith.addf %143, %17 : vector<8x128xf32>
    %145 = vector.extract_strided_slice %144 {offsets = [0, 32], sizes = [8, 32], strides = [1, 1]} : vector<8x128xf32> to vector<8x32xf32>
    %146 = arith.mulf %145, %116 : vector<8x32xf32>
    %147 = vector.extract_strided_slice %144 {offsets = [0, 0], sizes = [8, 32], strides = [1, 1]} : vector<8x128xf32> to vector<8x32xf32>
    %148 = vector.extract_strided_slice %144 {offsets = [0, 64], sizes = [8, 32], strides = [1, 1]} : vector<8x128xf32> to vector<8x32xf32>
    %149 = arith.mulf %147, %148 : vector<8x32xf32>
    %150 = arith.addf %146, %149 : vector<8x32xf32>
    %151 = vector.extract_strided_slice %144 {offsets = [0, 96], sizes = [8, 32], strides = [1, 1]} : vector<8x128xf32> to vector<8x32xf32>
    %152 = math.tanh %150 : vector<8x32xf32>
    %153 = arith.mulf %151, %152 : vector<8x32xf32>
    %154 = arith.truncf %153 : vector<8x32xf32> to vector<8x32xbf16>
    %cst_31 = arith.constant dense<0.000000e+00> : vector<8x128xf32>
    %155 = tpu.matmul %154, %8, %cst_31 {dimension_numbers = #tpu.dot_dimension_numbers<[1], [0], [0], [1], [0, 0, 1, 1], [], []>} : vector<8x32xbf16>, vector<32x128xbf16>, vector<8x128xf32> -> vector<8x128xf32>
    %c32 = arith.constant 32 : index
    %c0_32 = arith.constant 0 : index
    %156 = vector.load %arg13[%c32, %c0_32] : memref<64x128xf32, #tpu.memory_space<vmem>>, vector<8x128xf32>
    %157 = arith.addf %156, %138 : vector<8x128xf32>
    %158 = math.tanh %157 : vector<8x128xf32>
    %159 = arith.mulf %158, %14 : vector<8x128xf32>
    %160 = arith.addf %159, %17 : vector<8x128xf32>
    %161 = vector.extract_strided_slice %160 {offsets = [0, 32], sizes = [8, 32], strides = [1, 1]} : vector<8x128xf32> to vector<8x32xf32>
    %162 = arith.mulf %161, %132 : vector<8x32xf32>
    %163 = vector.extract_strided_slice %160 {offsets = [0, 0], sizes = [8, 32], strides = [1, 1]} : vector<8x128xf32> to vector<8x32xf32>
    %164 = vector.extract_strided_slice %160 {offsets = [0, 64], sizes = [8, 32], strides = [1, 1]} : vector<8x128xf32> to vector<8x32xf32>
    %165 = arith.mulf %163, %164 : vector<8x32xf32>
    %166 = arith.addf %162, %165 : vector<8x32xf32>
    %167 = vector.extract_strided_slice %160 {offsets = [0, 96], sizes = [8, 32], strides = [1, 1]} : vector<8x128xf32> to vector<8x32xf32>
    %168 = math.tanh %166 : vector<8x32xf32>
    %169 = arith.mulf %167, %168 : vector<8x32xf32>
    %170 = arith.truncf %169 : vector<8x32xf32> to vector<8x32xbf16>
    %cst_33 = arith.constant dense<0.000000e+00> : vector<8x256xf32>
    %171 = tpu.matmul %170, %7, %cst_33 {dimension_numbers = #tpu.dot_dimension_numbers<[1], [0], [0], [1], [0, 0, 1, 1], [], []>} : vector<8x32xbf16>, vector<32x256xbf16>, vector<8x256xf32> -> vector<8x256xf32>
    %172 = vector.extract_strided_slice %171 {offsets = [0, 0], sizes = [8, 128], strides = [1, 1]} : vector<8x256xf32> to vector<8x128xf32>
    %173 = vector.extract_strided_slice %171 {offsets = [0, 128], sizes = [8, 128], strides = [1, 1]} : vector<8x256xf32> to vector<8x128xf32>
    %174 = arith.addf %173, %155 : vector<8x128xf32>
    %175 = arith.addf %174, %11 : vector<8x128xf32>
    %176 = math.tanh %175 : vector<8x128xf32>
    %177 = arith.mulf %176, %14 : vector<8x128xf32>
    %178 = arith.addf %177, %17 : vector<8x128xf32>
    %179 = vector.extract_strided_slice %178 {offsets = [0, 32], sizes = [8, 32], strides = [1, 1]} : vector<8x128xf32> to vector<8x32xf32>
    %180 = arith.mulf %179, %150 : vector<8x32xf32>
    %181 = vector.extract_strided_slice %178 {offsets = [0, 0], sizes = [8, 32], strides = [1, 1]} : vector<8x128xf32> to vector<8x32xf32>
    %182 = vector.extract_strided_slice %178 {offsets = [0, 64], sizes = [8, 32], strides = [1, 1]} : vector<8x128xf32> to vector<8x32xf32>
    %183 = arith.mulf %181, %182 : vector<8x32xf32>
    %184 = arith.addf %180, %183 : vector<8x32xf32>
    %185 = vector.extract_strided_slice %178 {offsets = [0, 96], sizes = [8, 32], strides = [1, 1]} : vector<8x128xf32> to vector<8x32xf32>
    %186 = math.tanh %184 : vector<8x32xf32>
    %187 = arith.mulf %185, %186 : vector<8x32xf32>
    %188 = arith.truncf %187 : vector<8x32xf32> to vector<8x32xbf16>
    %cst_34 = arith.constant dense<0.000000e+00> : vector<8x128xf32>
    %189 = tpu.matmul %188, %8, %cst_34 {dimension_numbers = #tpu.dot_dimension_numbers<[1], [0], [0], [1], [0, 0, 1, 1], [], []>} : vector<8x32xbf16>, vector<32x128xbf16>, vector<8x128xf32> -> vector<8x128xf32>
    %c40 = arith.constant 40 : index
    %c0_35 = arith.constant 0 : index
    %190 = vector.load %arg13[%c40, %c0_35] : memref<64x128xf32, #tpu.memory_space<vmem>>, vector<8x128xf32>
    %191 = arith.addf %190, %172 : vector<8x128xf32>
    %192 = math.tanh %191 : vector<8x128xf32>
    %193 = arith.mulf %192, %14 : vector<8x128xf32>
    %194 = arith.addf %193, %17 : vector<8x128xf32>
    %195 = vector.extract_strided_slice %194 {offsets = [0, 32], sizes = [8, 32], strides = [1, 1]} : vector<8x128xf32> to vector<8x32xf32>
    %196 = arith.mulf %195, %166 : vector<8x32xf32>
    %197 = vector.extract_strided_slice %194 {offsets = [0, 0], sizes = [8, 32], strides = [1, 1]} : vector<8x128xf32> to vector<8x32xf32>
    %198 = vector.extract_strided_slice %194 {offsets = [0, 64], sizes = [8, 32], strides = [1, 1]} : vector<8x128xf32> to vector<8x32xf32>
    %199 = arith.mulf %197, %198 : vector<8x32xf32>
    %200 = arith.addf %196, %199 : vector<8x32xf32>
    %201 = vector.extract_strided_slice %194 {offsets = [0, 96], sizes = [8, 32], strides = [1, 1]} : vector<8x128xf32> to vector<8x32xf32>
    %202 = math.tanh %200 : vector<8x32xf32>
    %203 = arith.mulf %201, %202 : vector<8x32xf32>
    %204 = arith.truncf %203 : vector<8x32xf32> to vector<8x32xbf16>
    %cst_36 = arith.constant dense<0.000000e+00> : vector<8x256xf32>
    %205 = tpu.matmul %204, %7, %cst_36 {dimension_numbers = #tpu.dot_dimension_numbers<[1], [0], [0], [1], [0, 0, 1, 1], [], []>} : vector<8x32xbf16>, vector<32x256xbf16>, vector<8x256xf32> -> vector<8x256xf32>
    %206 = vector.extract_strided_slice %205 {offsets = [0, 0], sizes = [8, 128], strides = [1, 1]} : vector<8x256xf32> to vector<8x128xf32>
    %207 = vector.extract_strided_slice %205 {offsets = [0, 128], sizes = [8, 128], strides = [1, 1]} : vector<8x256xf32> to vector<8x128xf32>
    %208 = arith.addf %207, %189 : vector<8x128xf32>
    %209 = arith.addf %208, %11 : vector<8x128xf32>
    %210 = math.tanh %209 : vector<8x128xf32>
    %211 = arith.mulf %210, %14 : vector<8x128xf32>
    %212 = arith.addf %211, %17 : vector<8x128xf32>
    %213 = vector.extract_strided_slice %212 {offsets = [0, 32], sizes = [8, 32], strides = [1, 1]} : vector<8x128xf32> to vector<8x32xf32>
    %214 = arith.mulf %213, %184 : vector<8x32xf32>
    %215 = vector.extract_strided_slice %212 {offsets = [0, 0], sizes = [8, 32], strides = [1, 1]} : vector<8x128xf32> to vector<8x32xf32>
    %216 = vector.extract_strided_slice %212 {offsets = [0, 64], sizes = [8, 32], strides = [1, 1]} : vector<8x128xf32> to vector<8x32xf32>
    %217 = arith.mulf %215, %216 : vector<8x32xf32>
    %218 = arith.addf %214, %217 : vector<8x32xf32>
    %219 = vector.extract_strided_slice %212 {offsets = [0, 96], sizes = [8, 32], strides = [1, 1]} : vector<8x128xf32> to vector<8x32xf32>
    %220 = math.tanh %218 : vector<8x32xf32>
    %221 = arith.mulf %219, %220 : vector<8x32xf32>
    %222 = arith.truncf %221 : vector<8x32xf32> to vector<8x32xbf16>
    %cst_37 = arith.constant dense<0.000000e+00> : vector<8x128xf32>
    %223 = tpu.matmul %222, %8, %cst_37 {dimension_numbers = #tpu.dot_dimension_numbers<[1], [0], [0], [1], [0, 0, 1, 1], [], []>} : vector<8x32xbf16>, vector<32x128xbf16>, vector<8x128xf32> -> vector<8x128xf32>
    %c48 = arith.constant 48 : index
    %c0_38 = arith.constant 0 : index
    %224 = vector.load %arg13[%c48, %c0_38] : memref<64x128xf32, #tpu.memory_space<vmem>>, vector<8x128xf32>
    %225 = arith.addf %224, %206 : vector<8x128xf32>
    %226 = math.tanh %225 : vector<8x128xf32>
    %227 = arith.mulf %226, %14 : vector<8x128xf32>
    %228 = arith.addf %227, %17 : vector<8x128xf32>
    %229 = vector.extract_strided_slice %228 {offsets = [0, 32], sizes = [8, 32], strides = [1, 1]} : vector<8x128xf32> to vector<8x32xf32>
    %230 = arith.mulf %229, %200 : vector<8x32xf32>
    %231 = vector.extract_strided_slice %228 {offsets = [0, 0], sizes = [8, 32], strides = [1, 1]} : vector<8x128xf32> to vector<8x32xf32>
    %232 = vector.extract_strided_slice %228 {offsets = [0, 64], sizes = [8, 32], strides = [1, 1]} : vector<8x128xf32> to vector<8x32xf32>
    %233 = arith.mulf %231, %232 : vector<8x32xf32>
    %234 = arith.addf %230, %233 : vector<8x32xf32>
    %235 = vector.extract_strided_slice %228 {offsets = [0, 96], sizes = [8, 32], strides = [1, 1]} : vector<8x128xf32> to vector<8x32xf32>
    %236 = math.tanh %234 : vector<8x32xf32>
    %237 = arith.mulf %235, %236 : vector<8x32xf32>
    %238 = arith.truncf %237 : vector<8x32xf32> to vector<8x32xbf16>
    %cst_39 = arith.constant dense<0.000000e+00> : vector<8x256xf32>
    %239 = tpu.matmul %238, %7, %cst_39 {dimension_numbers = #tpu.dot_dimension_numbers<[1], [0], [0], [1], [0, 0, 1, 1], [], []>} : vector<8x32xbf16>, vector<32x256xbf16>, vector<8x256xf32> -> vector<8x256xf32>
    %240 = vector.extract_strided_slice %239 {offsets = [0, 0], sizes = [8, 128], strides = [1, 1]} : vector<8x256xf32> to vector<8x128xf32>
    %241 = vector.extract_strided_slice %239 {offsets = [0, 128], sizes = [8, 128], strides = [1, 1]} : vector<8x256xf32> to vector<8x128xf32>
    %242 = arith.addf %241, %223 : vector<8x128xf32>
    %243 = arith.addf %242, %11 : vector<8x128xf32>
    %244 = math.tanh %243 : vector<8x128xf32>
    %245 = arith.mulf %244, %14 : vector<8x128xf32>
    %246 = arith.addf %245, %17 : vector<8x128xf32>
    %247 = vector.extract_strided_slice %246 {offsets = [0, 32], sizes = [8, 32], strides = [1, 1]} : vector<8x128xf32> to vector<8x32xf32>
    %248 = arith.mulf %247, %218 : vector<8x32xf32>
    %249 = vector.extract_strided_slice %246 {offsets = [0, 0], sizes = [8, 32], strides = [1, 1]} : vector<8x128xf32> to vector<8x32xf32>
    %250 = vector.extract_strided_slice %246 {offsets = [0, 64], sizes = [8, 32], strides = [1, 1]} : vector<8x128xf32> to vector<8x32xf32>
    %251 = arith.mulf %249, %250 : vector<8x32xf32>
    %252 = arith.addf %248, %251 : vector<8x32xf32>
    %253 = vector.extract_strided_slice %246 {offsets = [0, 96], sizes = [8, 32], strides = [1, 1]} : vector<8x128xf32> to vector<8x32xf32>
    %254 = math.tanh %252 : vector<8x32xf32>
    %255 = arith.mulf %253, %254 : vector<8x32xf32>
    %256 = arith.truncf %255 : vector<8x32xf32> to vector<8x32xbf16>
    %cst_40 = arith.constant dense<0.000000e+00> : vector<8x128xf32>
    %257 = tpu.matmul %256, %8, %cst_40 {dimension_numbers = #tpu.dot_dimension_numbers<[1], [0], [0], [1], [0, 0, 1, 1], [], []>} : vector<8x32xbf16>, vector<32x128xbf16>, vector<8x128xf32> -> vector<8x128xf32>
    %c56 = arith.constant 56 : index
    %c0_41 = arith.constant 0 : index
    %258 = vector.load %arg13[%c56, %c0_41] : memref<64x128xf32, #tpu.memory_space<vmem>>, vector<8x128xf32>
    %259 = arith.addf %258, %240 : vector<8x128xf32>
    %260 = math.tanh %259 : vector<8x128xf32>
    %261 = arith.mulf %260, %14 : vector<8x128xf32>
    %262 = arith.addf %261, %17 : vector<8x128xf32>
    %263 = vector.extract_strided_slice %262 {offsets = [0, 32], sizes = [8, 32], strides = [1, 1]} : vector<8x128xf32> to vector<8x32xf32>
    %264 = arith.mulf %263, %234 : vector<8x32xf32>
    %265 = vector.extract_strided_slice %262 {offsets = [0, 0], sizes = [8, 32], strides = [1, 1]} : vector<8x128xf32> to vector<8x32xf32>
    %266 = vector.extract_strided_slice %262 {offsets = [0, 64], sizes = [8, 32], strides = [1, 1]} : vector<8x128xf32> to vector<8x32xf32>
    %267 = arith.mulf %265, %266 : vector<8x32xf32>
    %268 = arith.addf %264, %267 : vector<8x32xf32>
    %269 = vector.extract_strided_slice %262 {offsets = [0, 96], sizes = [8, 32], strides = [1, 1]} : vector<8x128xf32> to vector<8x32xf32>
    %270 = math.tanh %268 : vector<8x32xf32>
    %271 = arith.mulf %269, %270 : vector<8x32xf32>
    %272 = arith.truncf %271 : vector<8x32xf32> to vector<8x32xbf16>
    %cst_42 = arith.constant dense<0.000000e+00> : vector<8x256xf32>
    %273 = tpu.matmul %272, %7, %cst_42 {dimension_numbers = #tpu.dot_dimension_numbers<[1], [0], [0], [1], [0, 0, 1, 1], [], []>} : vector<8x32xbf16>, vector<32x256xbf16>, vector<8x256xf32> -> vector<8x256xf32>
    %274 = vector.extract_strided_slice %273 {offsets = [0, 128], sizes = [8, 128], strides = [1, 1]} : vector<8x256xf32> to vector<8x128xf32>
    %275 = arith.addf %274, %257 : vector<8x128xf32>
    %276 = arith.addf %275, %11 : vector<8x128xf32>
    %277 = math.tanh %276 : vector<8x128xf32>
    %278 = arith.mulf %277, %14 : vector<8x128xf32>
    %279 = arith.addf %278, %17 : vector<8x128xf32>
    %280 = vector.extract_strided_slice %279 {offsets = [0, 32], sizes = [8, 32], strides = [1, 1]} : vector<8x128xf32> to vector<8x32xf32>
    %281 = arith.mulf %280, %252 : vector<8x32xf32>
    %282 = vector.extract_strided_slice %279 {offsets = [0, 0], sizes = [8, 32], strides = [1, 1]} : vector<8x128xf32> to vector<8x32xf32>
    %283 = vector.extract_strided_slice %279 {offsets = [0, 64], sizes = [8, 32], strides = [1, 1]} : vector<8x128xf32> to vector<8x32xf32>
    %284 = arith.mulf %282, %283 : vector<8x32xf32>
    %285 = arith.addf %281, %284 : vector<8x32xf32>
    %286 = vector.extract_strided_slice %279 {offsets = [0, 96], sizes = [8, 32], strides = [1, 1]} : vector<8x128xf32> to vector<8x32xf32>
    %287 = math.tanh %285 : vector<8x32xf32>
    %288 = arith.mulf %286, %287 : vector<8x32xf32>
    %cst_43 = arith.constant dense<0.000000e+00> : vector<8xf32>
    %289 = vector.multi_reduction <add>, %288, %cst_43 [1] : vector<8x32xf32> to vector<8xf32>
    %290 = vector.shape_cast %289 : vector<8xf32> to vector<8x1xf32>
    %cst_44 = arith.constant 3.200000e+01 : f32
    %291 = vector.broadcast %cst_44 : f32 to vector<8x1xf32>
    %292 = arith.divf %290, %291 : vector<8x1xf32>
    %293 = arith.mulf %288, %288 : vector<8x32xf32>
    %cst_45 = arith.constant dense<0.000000e+00> : vector<8xf32>
    %294 = vector.multi_reduction <add>, %293, %cst_45 [1] : vector<8x32xf32> to vector<8xf32>
    %295 = vector.shape_cast %294 : vector<8xf32> to vector<8x1xf32>
    %cst_46 = arith.constant 3.200000e+01 : f32
    %296 = vector.broadcast %cst_46 : f32 to vector<8x1xf32>
    %297 = arith.divf %295, %296 : vector<8x1xf32>
    %298 = arith.mulf %292, %292 : vector<8x1xf32>
    %299 = arith.subf %297, %298 : vector<8x1xf32>
    %cst_47 = arith.constant 0.000000e+00 : f32
    %300 = vector.broadcast %cst_47 : f32 to vector<8x1xf32>
    %301 = arith.maximumf %299, %300 : vector<8x1xf32>
    %302 = vector.broadcast %292 : vector<8x1xf32> to vector<8x32xf32>
    %303 = arith.subf %288, %302 : vector<8x32xf32>
    %cst_48 = arith.constant 9.99999974E-6 : f32
    %304 = vector.broadcast %cst_48 : f32 to vector<8x1xf32>
    %305 = arith.addf %301, %304 : vector<8x1xf32>
    %306 = math.rsqrt %305 : vector<8x1xf32>
    %307 = vector.broadcast %306 : vector<8x1xf32> to vector<8x32xf32>
    %308 = arith.mulf %303, %307 : vector<8x32xf32>
    %c0_49 = arith.constant 0 : index
    %c0_50 = arith.constant 0 : index
    %309 = vector.load %arg8[%c0_49, %c0_50] : memref<1x32xf32, #tpu.memory_space<vmem>>, vector<1x32xf32>
    %310 = vector.broadcast %309 : vector<1x32xf32> to vector<8x32xf32>
    %311 = arith.mulf %308, %310 : vector<8x32xf32>
    %c0_51 = arith.constant 0 : index
    %c0_52 = arith.constant 0 : index
    %312 = vector.load %arg9[%c0_51, %c0_52] : memref<1x32xf32, #tpu.memory_space<vmem>>, vector<1x32xf32>
    %313 = vector.broadcast %312 : vector<1x32xf32> to vector<8x32xf32>
    %314 = arith.addf %311, %313 : vector<8x32xf32>
    %c0_53 = arith.constant 0 : index
    %c0_54 = arith.constant 0 : index
    %315 = vector.load %arg10[%c0_53, %c0_54] : memref<32x128xf32, #tpu.memory_space<vmem>>, vector<32x128xf32>
    %cst_55 = arith.constant dense<0.000000e+00> : vector<8x128xf32>
    %316 = tpu.matmul %314, %315, %cst_55 {dimension_numbers = #tpu.dot_dimension_numbers<[1], [0], [0], [1], [0, 0, 1, 1], [], []>} : vector<8x32xf32>, vector<32x128xf32>, vector<8x128xf32> -> vector<8x128xf32>
    %c0_56 = arith.constant 0 : index
    %c0_57 = arith.constant 0 : index
    %317 = vector.load %arg11[%c0_56, %c0_57] : memref<1x128xf32, #tpu.memory_space<vmem>>, vector<1x128xf32>
    %318 = vector.broadcast %317 : vector<1x128xf32> to vector<8x128xf32>
    %319 = arith.addf %316, %318 : vector<8x128xf32>
    %c0_58 = arith.constant 0 : index
    %c0_59 = arith.constant 0 : index
    %320 = vector.load %arg12[%c0_58, %c0_59] : memref<8x128xf32, #tpu.memory_space<vmem>>, vector<8x128xf32>
    tpu.vector_store %arg12[%c0_58, %c0_59], %319 {strides = array<i32>} : memref<8x128xf32, #tpu.memory_space<vmem>>, vector<8x128xf32>,
    return
  }
}

</mosaic_0001>

<llo_original>
// kernel: regularized_lstm_forward.1
$region0: #{regularized_lstm_forward.1}
  #allocation0 [shape = 'u32[]', space=smem, size = 0x4, offset = 0x4, fixed_abs, tag = 'smem constant byte address 0x4 - core index']
  #allocation1 [shape = 'u32[72,128]{1,0:T(1,128)}', space=vmem, size = 0x9000, scoped, tag = 'internal scratch']
  #allocation2 [shape = 'f32[64,128]{1,0:T(8,128)}', space=vmem, size = 0x8000, scoped, tag = 'scratch operand']
  %s0 = inlined_call_operand.vmem [shape: f32[64,4], index: 0, kind: input, shape index: {}]
  %s1 = inlined_call_operand.vmem [shape: f32[4,128], index: 1, kind: input, shape index: {}]
  %s2 = inlined_call_operand.vmem [shape: f32[1,128], index: 2, kind: input, shape index: {}]
  %s3 = inlined_call_operand.vmem [shape: bf16[32,256], index: 3, kind: input, shape index: {}]
  %s4 = inlined_call_operand.vmem [shape: f32[1,128], index: 4, kind: input, shape index: {}]
  %s5 = inlined_call_operand.vmem [shape: bf16[32,128], index: 5, kind: input, shape index: {}]
  %s6 = inlined_call_operand.vmem [shape: f32[1,128], index: 6, kind: input, shape index: {}]
  %s7 = inlined_call_operand.vmem [shape: f32[1,128], index: 7, kind: input, shape index: {}]
  %s8 = inlined_call_operand.vmem [shape: f32[1,32], index: 8, kind: input, shape index: {}]
  %s9 = inlined_call_operand.vmem [shape: f32[1,32], index: 9, kind: input, shape index: {}]
  %s10 = inlined_call_operand.vmem [shape: f32[32,128], index: 10, kind: input, shape index: {}]
  %s11 = inlined_call_operand.vmem [shape: f32[1,128], index: 11, kind: input, shape index: {}]
  %s12 = inlined_call_operand.vmem [shape: f32[8,128], index: 12, kind: output, shape index: {}]
  %s13 = sld [smem:[#allocation0]]
  $region58: #{regularized_lstm_forward.1} parent=0
    _
  %s15 = ssub.s32 1, %s13
  %s16 = scalar_select 0, %s15, %s13
  // Predicated region
  $region2: #{regularized_lstm_forward.1} parent=0 // pred_check
    _
  $region3: #{regularized_lstm_forward.1} parent=0 // pred_check_branch
    %18 = sbr.rel (0) target = $region5
  $region4: #{regularized_lstm_forward.1} parent=0 // pred_region
    _
  $region5: #{regularized_lstm_forward.1} parent=0 // pred_fallthru
    _
  // Predicated region
  $region6: #{regularized_lstm_forward.1} parent=0 // pred_check
    _
  $region7: #{regularized_lstm_forward.1} parent=0 // pred_check_branch
    %20 = sbr.rel (0) target = $region9
  $region8: #{regularized_lstm_forward.1} parent=0 // pred_region
    _
  $region9: #{regularized_lstm_forward.1} parent=0 // pred_fallthru
    _
  // Predicated region
  $region10: #{regularized_lstm_forward.1} parent=0 // pred_check
    _
  $region11: #{regularized_lstm_forward.1} parent=0 // pred_check_branch
    %22 = sbr.rel (0) target = $region13
  $region12: #{regularized_lstm_forward.1} parent=0 // pred_region
    _
  $region13: #{regularized_lstm_forward.1} parent=0 // pred_fallthru
    _
  // Predicated region
  $region14: #{regularized_lstm_forward.1} parent=0 // pred_check
    _
  $region15: #{regularized_lstm_forward.1} parent=0 // pred_check_branch
    %24 = sbr.rel (0) target = $region17
  $region16: #{regularized_lstm_forward.1} parent=0 // pred_region
    _
  $region17: #{regularized_lstm_forward.1} parent=0 // pred_fallthru
    _
  // Predicated region
  $region18: #{regularized_lstm_forward.1} parent=0 // pred_check
    _
  $region19: #{regularized_lstm_forward.1} parent=0 // pred_check_branch
    %26 = sbr.rel (0) target = $region21
  $region20: #{regularized_lstm_forward.1} parent=0 // pred_region
    _
  $region21: #{regularized_lstm_forward.1} parent=0 // pred_fallthru
    _
  // Predicated region
  $region22: #{regularized_lstm_forward.1} parent=0 // pred_check
    _
  $region23: #{regularized_lstm_forward.1} parent=0 // pred_check_branch
    %28 = sbr.rel (0) target = $region25
  $region24: #{regularized_lstm_forward.1} parent=0 // pred_region
    _
  $region25: #{regularized_lstm_forward.1} parent=0 // pred_fallthru
    _
  // Predicated region
  $region26: #{regularized_lstm_forward.1} parent=0 // pred_check
    _
  $region27: #{regularized_lstm_forward.1} parent=0 // pred_check_branch
    %30 = sbr.rel (0) target = $region29
  $region28: #{regularized_lstm_forward.1} parent=0 // pred_region
    _
  $region29: #{regularized_lstm_forward.1} parent=0 // pred_fallthru
    _
  // Predicated region
  $region30: #{regularized_lstm_forward.1} parent=0 // pred_check
    _
  $region31: #{regularized_lstm_forward.1} parent=0 // pred_check_branch
    %32 = sbr.rel (0) target = $region33
  $region32: #{regularized_lstm_forward.1} parent=0 // pred_region
    _
  $region33: #{regularized_lstm_forward.1} parent=0 // pred_fallthru
    _
  // Predicated region
  $region34: #{regularized_lstm_forward.1} parent=0 // pred_check
    _
  $region35: #{regularized_lstm_forward.1} parent=0 // pred_check_branch
    %34 = sbr.rel (0) target = $region37
  $region36: #{regularized_lstm_forward.1} parent=0 // pred_region
    _
  $region37: #{regularized_lstm_forward.1} parent=0 // pred_fallthru
    _
  // Predicated region
  $region38: #{regularized_lstm_forward.1} parent=0 // pred_check
    _
  $region39: #{regularized_lstm_forward.1} parent=0 // pred_check_branch
    %36 = sbr.rel (0) target = $region41
  $region40: #{regularized_lstm_forward.1} parent=0 // pred_region
    _
  $region41: #{regularized_lstm_forward.1} parent=0 // pred_fallthru
    _
  // Predicated region
  $region42: #{regularized_lstm_forward.1} parent=0 // pred_check
    _
  $region43: #{regularized_lstm_forward.1} parent=0 // pred_check_branch
    %38 = sbr.rel (0) target = $region45
  $region44: #{regularized_lstm_forward.1} parent=0 // pred_region
    _
  $region45: #{regularized_lstm_forward.1} parent=0 // pred_fallthru
    _
  // Predicated region
  $region46: #{regularized_lstm_forward.1} parent=0 // pred_check
    _
  $region47: #{regularized_lstm_forward.1} parent=0 // pred_check_branch
    %40 = sbr.rel (0) target = $region49
  $region48: #{regularized_lstm_forward.1} parent=0 // pred_region
    _
  $region49: #{regularized_lstm_forward.1} parent=0 // pred_fallthru
    _
  %v42 = vld [vmem:[%s0] sm:$0xff]
  %v43 = vld [vmem:[%s0 + $0x8] sm:$0xff]
  %v44 = vld [vmem:[%s0 + $0x10] sm:$0xff]
  %v45 = vld [vmem:[%s0 + $0x18] sm:$0xff]
  %v46 = vld [vmem:[%s0 + $0x20] sm:$0xff]
  %v47 = vld [vmem:[%s0 + $0x28] sm:$0xff]
  %v48 = vld [vmem:[%s0 + $0x30] sm:$0xff]
  %v49 = vld [vmem:[%s0 + $0x38] sm:$0xff]
  %v50 = vld [vmem:[%s1] sm:$0xf]
  %v51 = vld [vmem:[%s2] sm:$0x1]
  %v53 = vperm.slane %v51, 0
  %vm55 = vcmask 31744
  %v57 = vsel %vm55, %v42, 0
  %v60 = vsel %vm55, %v43, 0
  %v63 = vsel %vm55, %v44, 0
  %v66 = vsel %vm55, %v45, 0
  %v69 = vsel %vm55, %v46, 0
  %v72 = vsel %vm55, %v47, 0
  %v75 = vsel %vm55, %v48, 0
  %v78 = vsel %vm55, %v49, 0
  %vm80 = vcmask 1043456
  %v82 = vsel %vm80, %v50, 0
  %84 = vmatpush.msra.mxu0 0.0
  %85 = vmatpush.msra.mxu0 0.0
  %86 = vmatpush.msra.mxu0 0.0
  %87 = vmatpush.msra.mxu0 0.0
  %88 = vmatpush.msra.mxu0 0.0
  %89 = vmatpush.msra.mxu0 0.0
  %90 = vmatpush.msra.mxu0 0.0
  %91 = vmatpush.msra.mxu0 0.0
  %92 = vmatpush.msra.mxu0 0.0
  %93 = vmatpush.msra.mxu0 0.0
  %94 = vmatpush.msra.mxu0 0.0
  %95 = vmatpush.msra.mxu0 0.0
  %96 = vmatpush.msra.mxu0 0.0
  %97 = vmatpush.msra.mxu0 0.0
  %98 = vmatpush.msra.mxu0 0.0
  %99 = vmatpush.msra.mxu0 %v82
  %100 = vmatmul.f32.gmra.mxu0 %v57
  %v101 = vpop.f32.mrf.mxu0
  %v102 = vadd.f32 %v53, %v101
  %103 = vmatmul.f32.gmra.mxu0 %v60
  %v104 = vpop.f32.mrf.mxu0
  %v105 = vadd.f32 %v53, %v104
  %106 = vmatmul.f32.gmra.mxu0 %v63
  %v107 = vpop.f32.mrf.mxu0
  %v108 = vadd.f32 %v53, %v107
  %109 = vmatmul.f32.gmra.mxu0 %v66
  %v110 = vpop.f32.mrf.mxu0
  %v111 = vadd.f32 %v53, %v110
  %112 = vmatmul.f32.gmra.mxu0 %v69
  %v113 = vpop.f32.mrf.mxu0
  %v114 = vadd.f32 %v53, %v113
  %115 = vmatmul.f32.gmra.mxu0 %v72
  %v116 = vpop.f32.mrf.mxu0
  %v117 = vadd.f32 %v53, %v116
  %118 = vmatmul.f32.gmra.mxu0 %v75
  %v119 = vpop.f32.mrf.mxu0
  %v120 = vadd.f32 %v53, %v119
  %121 = vmatmul.f32.gmra.mxu0 %v78
  %v122 = vpop.f32.mrf.mxu0
  %v123 = vadd.f32 %v53, %v122
  %124 = vdwg.mxu0
  %125 = vst [vmem:[#allocation2] sm:$0xff] %v102
  %126 = vst [vmem:[#allocation2 + $0x8] sm:$0xff] %v105
  %127 = vst [vmem:[#allocation2 + $0x10] sm:$0xff] %v108
  %128 = vst [vmem:[#allocation2 + $0x18] sm:$0xff] %v111
  %129 = vst [vmem:[#allocation2 + $0x20] sm:$0xff] %v114
  %130 = vst [vmem:[#allocation2 + $0x28] sm:$0xff] %v117
  %131 = vst [vmem:[#allocation2 + $0x30] sm:$0xff] %v120
  %132 = vst [vmem:[#allocation2 + $0x38] sm:$0xff] %v123
  %v133 = vld [vmem:[%s3] sm:$0xff]
  %v134 = vld [vmem:[%s3 + $0x8] sm:$0xff]
  %v135 = vld [vmem:[%s3 + $0x10] sm:$0xff]
  %v136 = vld [vmem:[%s3 + $0x18] sm:$0xff]
  %v137 = vld [vmem:[%s5] sm:$0xf]
  %v138 = vld [vmem:[%s5 + $0x4] sm:$0xf]
  %v139 = vld [vmem:[%s5 + $0x8] sm:$0xf]
  %v140 = vld [vmem:[%s5 + $0xc] sm:$0xf]
  %v141 = vld [vmem:[%s4] sm:$0x1]
  %v143 = vperm.slane %v141, 0
  %v145 = vld [vmem:[%s6] sm:$0x1]
  %v147 = vperm.slane %v145, 0
  %v149 = vld [vmem:[%s7] sm:$0x1]
  %v151 = vperm.slane %v149, 0
  %v153 = vld [vmem:[#allocation2] sm:$0xff]
  %v154 = vadd.f32 %v153, 0.0
  %v155 = vtanh.pop %v154
  %v156 = vmul.f32 %v155, %v147
  %v157 = vadd.f32 %v156, %v151
  %v158 = vmul.f32 %v157, 0.0
  %160 = vrot.lane.b32.xlu0 %v157, 64
  %v161 = vpop.permute.xlu0 %160
  %v163 = vmul.f32 %v157, %v161
  %165 = vrot.lane.b32.xlu0 %v163, 32
  %v166 = vpop.permute.xlu0 %165
  %v168 = vadd.f32 %v158, %v166
  %v169 = vtanh.pop %v168
  %171 = vrot.lane.b32.xlu0 %v169, 64
  %v172 = vpop.permute.xlu0 %171
  %v174 = vmul.f32 %v157, %v172
  %v175 = vpack.c.bf16 %v174, %v174
  %177 = vrot.lane.b32.xlu0 %v175, 32
  %v178 = vpop.permute.xlu0 %177
  %v183 = vunpack.c.l.b16 %v133
  %v184 = vunpack.c.h.b16 %v133
  %v185 = vunpack.c.l.b16 %v134
  %v186 = vunpack.c.h.b16 %v134
  %v187 = vunpack.c.l.b16 %v135
  %v188 = vunpack.c.h.b16 %v135
  %v189 = vunpack.c.l.b16 %v136
  %v190 = vunpack.c.h.b16 %v136
  %v191 = vpack.c.b16 %v185, %v183
  %v192 = vpack.c.b16 %v186, %v184
  %v193 = vpack.c.b16 %v189, %v187
  %v194 = vpack.c.b16 %v190, %v188
  %vm199 = vcmask 261120
  %v201 = vsel %vm199, %v178, 0
  %203 = vmatpush.bf16.msra.mxu0 0
  %204 = vmatpush.bf16.msra.mxu0 0
  %205 = vmatpush.bf16.msra.mxu0 0
  %206 = vmatpush.bf16.msra.mxu0 0
  %207 = vmatpush.bf16.msra.mxu0 0
  %208 = vmatpush.bf16.msra.mxu0 0
  %209 = vmatpush.bf16.msra.mxu0 %v193
  %210 = vmatpush.bf16.msra.mxu0 %v191
  %211 = vmatmul.bf16.gmra.mxu0 %v201
  %v212 = vpop.f32.mrf.mxu0
  %v213 = vadd.f32 0.0, %v212
  %v214 = vpop.f32.mrf.mxu0
  %215 = vdwg.mxu0
  %216 = vmatpush.bf16.msra.mxu0 0
  %217 = vmatpush.bf16.msra.mxu0 0
  %218 = vmatpush.bf16.msra.mxu0 0
  %219 = vmatpush.bf16.msra.mxu0 0
  %220 = vmatpush.bf16.msra.mxu0 0
  %221 = vmatpush.bf16.msra.mxu0 0
  %222 = vmatpush.bf16.msra.mxu0 %v194
  %223 = vmatpush.bf16.msra.mxu0 %v192
  %224 = vmatmul.bf16.gmra.mxu0 %v201
  %v225 = vpop.f32.mrf.mxu0
  %v226 = vadd.f32 0.0, %v225
  %v227 = vpop.f32.mrf.mxu0
  %228 = vdwg.mxu0
  %v229 = vadd.f32 %v226, 0.0
  %v230 = vadd.f32 %v229, %v143
  %v231 = vtanh.pop %v230
  %v232 = vmul.f32 %v231, %v147
  %v233 = vadd.f32 %v232, %v151
  %v234 = vmul.f32 %v233, 0.0
  %236 = vrot.lane.b32.xlu0 %v233, 64
  %v237 = vpop.permute.xlu0 %236
  %v239 = vmul.f32 %v233, %v237
  %241 = vrot.lane.b32.xlu0 %v239, 32
  %v242 = vpop.permute.xlu0 %241
  %v244 = vadd.f32 %v234, %v242
  %v245 = vtanh.pop %v244
  %247 = vrot.lane.b32.xlu0 %v245, 64
  %v248 = vpop.permute.xlu0 %247
  %v250 = vmul.f32 %v233, %v248
  %v251 = vpack.c.bf16 %v250, %v250
  %253 = vrot.lane.b32.xlu0 %v251, 32
  %v254 = vpop.permute.xlu0 %253
  %v259 = vunpack.c.l.b16 %v137
  %v260 = vunpack.c.l.b16 %v138
  %v261 = vunpack.c.l.b16 %v139
  %v262 = vunpack.c.l.b16 %v140
  %v263 = vpack.c.b16 %v260, %v259
  %v264 = vpack.c.b16 %v262, %v261
  %v268 = vsel %vm199, %v254, 0
  %270 = vmatpush.bf16.msra.mxu0 0
  %271 = vmatpush.bf16.msra.mxu0 0
  %272 = vmatpush.bf16.msra.mxu0 0
  %273 = vmatpush.bf16.msra.mxu0 0
  %274 = vmatpush.bf16.msra.mxu0 0
  %275 = vmatpush.bf16.msra.mxu0 0
  %276 = vmatpush.bf16.msra.mxu0 %v264
  %277 = vmatpush.bf16.msra.mxu0 %v263
  %278 = vmatmul.bf16.gmra.mxu0 %v268
  %v279 = vpop.f32.mrf.mxu0
  %v280 = vadd.f32 0.0, %v279
  %v281 = vpop.f32.mrf.mxu0
  %282 = vdwg.mxu0
  %v283 = vld [vmem:[#allocation2 + $0x8] sm:$0xff]
  %v284 = vadd.f32 %v283, %v213
  %v285 = vtanh.pop %v284
  %v286 = vmul.f32 %v285, %v147
  %v287 = vadd.f32 %v286, %v151
  %v288 = vmul.f32 %v287, %v168
  %290 = vrot.lane.b32.xlu0 %v287, 64
  %v291 = vpop.permute.xlu0 %290
  %v293 = vmul.f32 %v287, %v291
  %295 = vrot.lane.b32.xlu0 %v293, 32
  %v296 = vpop.permute.xlu0 %295
  %v298 = vadd.f32 %v288, %v296
  %v299 = vtanh.pop %v298
  %301 = vrot.lane.b32.xlu0 %v299, 64
  %v302 = vpop.permute.xlu0 %301
  %v304 = vmul.f32 %v287, %v302
  %v305 = vpack.c.bf16 %v304, %v304
  %307 = vrot.lane.b32.xlu0 %v305, 32
  %v308 = vpop.permute.xlu0 %307
  %v310 = vsel %vm199, %v308, 0
  %312 = vmatpush.bf16.msra.mxu0 0
  %313 = vmatpush.bf16.msra.mxu0 0
  %314 = vmatpush.bf16.msra.mxu0 0
  %315 = vmatpush.bf16.msra.mxu0 0
  %316 = vmatpush.bf16.msra.mxu0 0
  %317 = vmatpush.bf16.msra.mxu0 0
  %318 = vmatpush.bf16.msra.mxu0 %v193
  %319 = vmatpush.bf16.msra.mxu0 %v191
  %320 = vmatmul.bf16.gmra.mxu0 %v310
  %v321 = vpop.f32.mrf.mxu0
  %v322 = vadd.f32 0.0, %v321
  %v323 = vpop.f32.mrf.mxu0
  %324 = vdwg.mxu0
  %325 = vmatpush.bf16.msra.mxu0 0
  %326 = vmatpush.bf16.msra.mxu0 0
  %327 = vmatpush.bf16.msra.mxu0 0
  %328 = vmatpush.bf16.msra.mxu0 0
  %329 = vmatpush.bf16.msra.mxu0 0
  %330 = vmatpush.bf16.msra.mxu0 0
  %331 = vmatpush.bf16.msra.mxu0 %v194
  %332 = vmatpush.bf16.msra.mxu0 %v192
  %333 = vmatmul.bf16.gmra.mxu0 %v310
  %v334 = vpop.f32.mrf.mxu0
  %v335 = vadd.f32 0.0, %v334
  %v336 = vpop.f32.mrf.mxu0
  %337 = vdwg.mxu0
  %v338 = vadd.f32 %v335, %v280
  %v339 = vadd.f32 %v338, %v143
  %v340 = vtanh.pop %v339
  %v341 = vmul.f32 %v340, %v147
  %v342 = vadd.f32 %v341, %v151
  %v343 = vmul.f32 %v342, %v244
  %345 = vrot.lane.b32.xlu0 %v342, 64
  %v346 = vpop.permute.xlu0 %345
  %v348 = vmul.f32 %v342, %v346
  %350 = vrot.lane.b32.xlu0 %v348, 32
  %v351 = vpop.permute.xlu0 %350
  %v353 = vadd.f32 %v343, %v351
  %v354 = vtanh.pop %v353
  %356 = vrot.lane.b32.xlu0 %v354, 64
  %v357 = vpop.permute.xlu0 %356
  %v359 = vmul.f32 %v342, %v357
  %v360 = vpack.c.bf16 %v359, %v359
  %362 = vrot.lane.b32.xlu0 %v360, 32
  %v363 = vpop.permute.xlu0 %362
  %v365 = vsel %vm199, %v363, 0
  %367 = vmatpush.bf16.msra.mxu0 0
  %368 = vmatpush.bf16.msra.mxu0 0
  %369 = vmatpush.bf16.msra.mxu0 0
  %370 = vmatpush.bf16.msra.mxu0 0
  %371 = vmatpush.bf16.msra.mxu0 0
  %372 = vmatpush.bf16.msra.mxu0 0
  %373 = vmatpush.bf16.msra.mxu0 %v264
  %374 = vmatpush.bf16.msra.mxu0 %v263
  %375 = vmatmul.bf16.gmra.mxu0 %v365
  %v376 = vpop.f32.mrf.mxu0
  %v377 = vadd.f32 0.0, %v376
  %v378 = vpop.f32.mrf.mxu0
  %379 = vdwg.mxu0
  %v380 = vld [vmem:[#allocation2 + $0x10] sm:$0xff]
  %v381 = vadd.f32 %v380, %v322
  %v382 = vtanh.pop %v381
  %v383 = vmul.f32 %v382, %v147
  %v384 = vadd.f32 %v383, %v151
  %v385 = vmul.f32 %v384, %v298
  %387 = vrot.lane.b32.xlu0 %v384, 64
  %v388 = vpop.permute.xlu0 %387
  %v390 = vmul.f32 %v384, %v388
  %392 = vrot.lane.b32.xlu0 %v390, 32
  %v393 = vpop.permute.xlu0 %392
  %v395 = vadd.f32 %v385, %v393
  %v396 = vtanh.pop %v395
  %398 = vrot.lane.b32.xlu0 %v396, 64
  %v399 = vpop.permute.xlu0 %398
  %v401 = vmul.f32 %v384, %v399
  %v402 = vpack.c.bf16 %v401, %v401
  %404 = vrot.lane.b32.xlu0 %v402, 32
  %v405 = vpop.permute.xlu0 %404
  %v407 = vsel %vm199, %v405, 0
  %409 = vmatpush.bf16.msra.mxu0 0
  %410 = vmatpush.bf16.msra.mxu0 0
  %411 = vmatpush.bf16.msra.mxu0 0
  %412 = vmatpush.bf16.msra.mxu0 0
  %413 = vmatpush.bf16.msra.mxu0 0
  %414 = vmatpush.bf16.msra.mxu0 0
  %415 = vmatpush.bf16.msra.mxu0 %v193
  %416 = vmatpush.bf16.msra.mxu0 %v191
  %417 = vmatmul.bf16.gmra.mxu0 %v407
  %v418 = vpop.f32.mrf.mxu0
  %v419 = vadd.f32 0.0, %v418
  %v420 = vpop.f32.mrf.mxu0
  %421 = vdwg.mxu0
  %422 = vmatpush.bf16.msra.mxu0 0
  %423 = vmatpush.bf16.msra.mxu0 0
  %424 = vmatpush.bf16.msra.mxu0 0
  %425 = vmatpush.bf16.msra.mxu0 0
  %426 = vmatpush.bf16.msra.mxu0 0
  %427 = vmatpush.bf16.msra.mxu0 0
  %428 = vmatpush.bf16.msra.mxu0 %v194
  %429 = vmatpush.bf16.msra.mxu0 %v192
  %430 = vmatmul.bf16.gmra.mxu0 %v407
  %v431 = vpop.f32.mrf.mxu0
  %v432 = vadd.f32 0.0, %v431
  %v433 = vpop.f32.mrf.mxu0
  %434 = vdwg.mxu0
  %v435 = vadd.f32 %v432, %v377
  %v436 = vadd.f32 %v435, %v143
  %v437 = vtanh.pop %v436
  %v438 = vmul.f32 %v437, %v147
  %v439 = vadd.f32 %v438, %v151
  %v440 = vmul.f32 %v439, %v353
  %442 = vrot.lane.b32.xlu0 %v439, 64
  %v443 = vpop.permute.xlu0 %442
  %v445 = vmul.f32 %v439, %v443
  %447 = vrot.lane.b32.xlu0 %v445, 32
  %v448 = vpop.permute.xlu0 %447
  %v450 = vadd.f32 %v440, %v448
  %v451 = vtanh.pop %v450
  %453 = vrot.lane.b32.xlu0 %v451, 64
  %v454 = vpop.permute.xlu0 %453
  %v456 = vmul.f32 %v439, %v454
  %v457 = vpack.c.bf16 %v456, %v456
  %459 = vrot.lane.b32.xlu0 %v457, 32
  %v460 = vpop.permute.xlu0 %459
  %v462 = vsel %vm199, %v460, 0
  %464 = vmatpush.bf16.msra.mxu0 0
  %465 = vmatpush.bf16.msra.mxu0 0
  %466 = vmatpush.bf16.msra.mxu0 0
  %467 = vmatpush.bf16.msra.mxu0 0
  %468 = vmatpush.bf16.msra.mxu0 0
  %469 = vmatpush.bf16.msra.mxu0 0
  %470 = vmatpush.bf16.msra.mxu0 %v264
  %471 = vmatpush.bf16.msra.mxu0 %v263
  %472 = vmatmul.bf16.gmra.mxu0 %v462
  %v473 = vpop.f32.mrf.mxu0
  %v474 = vadd.f32 0.0, %v473
  %v475 = vpop.f32.mrf.mxu0
  %476 = vdwg.mxu0
  %v477 = vld [vmem:[#allocation2 + $0x18] sm:$0xff]
  %v478 = vadd.f32 %v477, %v419
  %v479 = vtanh.pop %v478
  %v480 = vmul.f32 %v479, %v147
  %v481 = vadd.f32 %v480, %v151
  %v482 = vmul.f32 %v481, %v395
  %484 = vrot.lane.b32.xlu0 %v481, 64
  %v485 = vpop.permute.xlu0 %484
  %v487 = vmul.f32 %v481, %v485
  %489 = vrot.lane.b32.xlu0 %v487, 32
  %v490 = vpop.permute.xlu0 %489
  %v492 = vadd.f32 %v482, %v490
  %v493 = vtanh.pop %v492
  %495 = vrot.lane.b32.xlu0 %v493, 64
  %v496 = vpop.permute.xlu0 %495
  %v498 = vmul.f32 %v481, %v496
  %v499 = vpack.c.bf16 %v498, %v498
  %501 = vrot.lane.b32.xlu0 %v499, 32
  %v502 = vpop.permute.xlu0 %501
  %v504 = vsel %vm199, %v502, 0
  %506 = vmatpush.bf16.msra.mxu0 0
  %507 = vmatpush.bf16.msra.mxu0 0
  %508 = vmatpush.bf16.msra.mxu0 0
  %509 = vmatpush.bf16.msra.mxu0 0
  %510 = vmatpush.bf16.msra.mxu0 0
  %511 = vmatpush.bf16.msra.mxu0 0
  %512 = vmatpush.bf16.msra.mxu0 %v193
  %513 = vmatpush.bf16.msra.mxu0 %v191
  %514 = vmatmul.bf16.gmra.mxu0 %v504
  %v515 = vpop.f32.mrf.mxu0
  %v516 = vadd.f32 0.0, %v515
  %v517 = vpop.f32.mrf.mxu0
  %518 = vdwg.mxu0
  %519 = vmatpush.bf16.msra.mxu0 0
  %520 = vmatpush.bf16.msra.mxu0 0
  %521 = vmatpush.bf16.msra.mxu0 0
  %522 = vmatpush.bf16.msra.mxu0 0
  %523 = vmatpush.bf16.msra.mxu0 0
  %524 = vmatpush.bf16.msra.mxu0 0
  %525 = vmatpush.bf16.msra.mxu0 %v194
  %526 = vmatpush.bf16.msra.mxu0 %v192
  %527 = vmatmul.bf16.gmra.mxu0 %v504
  %v528 = vpop.f32.mrf.mxu0
  %v529 = vadd.f32 0.0, %v528
  %v530 = vpop.f32.mrf.mxu0
  %531 = vdwg.mxu0
  %v532 = vadd.f32 %v529, %v474
  %v533 = vadd.f32 %v532, %v143
  %v534 = vtanh.pop %v533
  %v535 = vmul.f32 %v534, %v147
  %v536 = vadd.f32 %v535, %v151
  %v537 = vmul.f32 %v536, %v450
  %539 = vrot.lane.b32.xlu0 %v536, 64
  %v540 = vpop.permute.xlu0 %539
  %v542 = vmul.f32 %v536, %v540
  %544 = vrot.lane.b32.xlu0 %v542, 32
  %v545 = vpop.permute.xlu0 %544
  %v547 = vadd.f32 %v537, %v545
  %v548 = vtanh.pop %v547
  %550 = vrot.lane.b32.xlu0 %v548, 64
  %v551 = vpop.permute.xlu0 %550
  %v553 = vmul.f32 %v536, %v551
  %v554 = vpack.c.bf16 %v553, %v553
  %556 = vrot.lane.b32.xlu0 %v554, 32
  %v557 = vpop.permute.xlu0 %556
  %v559 = vsel %vm199, %v557, 0
  %561 = vmatpush.bf16.msra.mxu0 0
  %562 = vmatpush.bf16.msra.mxu0 0
  %563 = vmatpush.bf16.msra.mxu0 0
  %564 = vmatpush.bf16.msra.mxu0 0
  %565 = vmatpush.bf16.msra.mxu0 0
  %566 = vmatpush.bf16.msra.mxu0 0
  %567 = vmatpush.bf16.msra.mxu0 %v264
  %568 = vmatpush.bf16.msra.mxu0 %v263
  %569 = vmatmul.bf16.gmra.mxu0 %v559
  %v570 = vpop.f32.mrf.mxu0
  %v571 = vadd.f32 0.0, %v570
  %v572 = vpop.f32.mrf.mxu0
  %573 = vdwg.mxu0
  %v574 = vld [vmem:[#allocation2 + $0x20] sm:$0xff]
  %v575 = vadd.f32 %v574, %v516
  %v576 = vtanh.pop %v575
  %v577 = vmul.f32 %v576, %v147
  %v578 = vadd.f32 %v577, %v151
  %v579 = vmul.f32 %v578, %v492
  %581 = vrot.lane.b32.xlu0 %v578, 64
  %v582 = vpop.permute.xlu0 %581
  %v584 = vmul.f32 %v578, %v582
  %586 = vrot.lane.b32.xlu0 %v584, 32
  %v587 = vpop.permute.xlu0 %586
  %v589 = vadd.f32 %v579, %v587
  %v590 = vtanh.pop %v589
  %592 = vrot.lane.b32.xlu0 %v590, 64
  %v593 = vpop.permute.xlu0 %592
  %v595 = vmul.f32 %v578, %v593
  %v596 = vpack.c.bf16 %v595, %v595
  %598 = vrot.lane.b32.xlu0 %v596, 32
  %v599 = vpop.permute.xlu0 %598
  %v601 = vsel %vm199, %v599, 0
  %603 = vmatpush.bf16.msra.mxu0 0
  %604 = vmatpush.bf16.msra.mxu0 0
  %605 = vmatpush.bf16.msra.mxu0 0
  %606 = vmatpush.bf16.msra.mxu0 0
  %607 = vmatpush.bf16.msra.mxu0 0
  %608 = vmatpush.bf16.msra.mxu0 0
  %609 = vmatpush.bf16.msra.mxu0 %v193
  %610 = vmatpush.bf16.msra.mxu0 %v191
  %611 = vmatmul.bf16.gmra.mxu0 %v601
  %v612 = vpop.f32.mrf.mxu0
  %v613 = vadd.f32 0.0, %v612
  %v614 = vpop.f32.mrf.mxu0
  %615 = vdwg.mxu0
  %616 = vmatpush.bf16.msra.mxu0 0
  %617 = vmatpush.bf16.msra.mxu0 0
  %618 = vmatpush.bf16.msra.mxu0 0
  %619 = vmatpush.bf16.msra.mxu0 0
  %620 = vmatpush.bf16.msra.mxu0 0
  %621 = vmatpush.bf16.msra.mxu0 0
  %622 = vmatpush.bf16.msra.mxu0 %v194
  %623 = vmatpush.bf16.msra.mxu0 %v192
  %624 = vmatmul.bf16.gmra.mxu0 %v601
  %v625 = vpop.f32.mrf.mxu0
  %v626 = vadd.f32 0.0, %v625
  %v627 = vpop.f32.mrf.mxu0
  %628 = vdwg.mxu0
  %v629 = vadd.f32 %v626, %v571
  %v630 = vadd.f32 %v629, %v143
  %v631 = vtanh.pop %v630
  %v632 = vmul.f32 %v631, %v147
  %v633 = vadd.f32 %v632, %v151
  %v634 = vmul.f32 %v633, %v547
  %636 = vrot.lane.b32.xlu0 %v633, 64
  %v637 = vpop.permute.xlu0 %636
  %v639 = vmul.f32 %v633, %v637
  %641 = vrot.lane.b32.xlu0 %v639, 32
  %v642 = vpop.permute.xlu0 %641
  %v644 = vadd.f32 %v634, %v642
  %v645 = vtanh.pop %v644
  %647 = vrot.lane.b32.xlu0 %v645, 64
  %v648 = vpop.permute.xlu0 %647
  %v650 = vmul.f32 %v633, %v648
  %v651 = vpack.c.bf16 %v650, %v650
  %653 = vrot.lane.b32.xlu0 %v651, 32
  %v654 = vpop.permute.xlu0 %653
  %v656 = vsel %vm199, %v654, 0
  %658 = vmatpush.bf16.msra.mxu0 0
  %659 = vmatpush.bf16.msra.mxu0 0
  %660 = vmatpush.bf16.msra.mxu0 0
  %661 = vmatpush.bf16.msra.mxu0 0
  %662 = vmatpush.bf16.msra.mxu0 0
  %663 = vmatpush.bf16.msra.mxu0 0
  %664 = vmatpush.bf16.msra.mxu0 %v264
  %665 = vmatpush.bf16.msra.mxu0 %v263
  %666 = vmatmul.bf16.gmra.mxu0 %v656
  %v667 = vpop.f32.mrf.mxu0
  %v668 = vadd.f32 0.0, %v667
  %v669 = vpop.f32.mrf.mxu0
  %670 = vdwg.mxu0
  %v671 = vld [vmem:[#allocation2 + $0x28] sm:$0xff]
  %v672 = vadd.f32 %v671, %v613
  %v673 = vtanh.pop %v672
  %v674 = vmul.f32 %v673, %v147
  %v675 = vadd.f32 %v674, %v151
  %v676 = vmul.f32 %v675, %v589
  %678 = vrot.lane.b32.xlu0 %v675, 64
  %v679 = vpop.permute.xlu0 %678
  %v681 = vmul.f32 %v675, %v679
  %683 = vrot.lane.b32.xlu0 %v681, 32
  %v684 = vpop.permute.xlu0 %683
  %v686 = vadd.f32 %v676, %v684
  %v687 = vtanh.pop %v686
  %689 = vrot.lane.b32.xlu0 %v687, 64
  %v690 = vpop.permute.xlu0 %689
  %v692 = vmul.f32 %v675, %v690
  %v693 = vpack.c.bf16 %v692, %v692
  %695 = vrot.lane.b32.xlu0 %v693, 32
  %v696 = vpop.permute.xlu0 %695
  %v698 = vsel %vm199, %v696, 0
  %700 = vmatpush.bf16.msra.mxu0 0
  %701 = vmatpush.bf16.msra.mxu0 0
  %702 = vmatpush.bf16.msra.mxu0 0
  %703 = vmatpush.bf16.msra.mxu0 0
  %704 = vmatpush.bf16.msra.mxu0 0
  %705 = vmatpush.bf16.msra.mxu0 0
  %706 = vmatpush.bf16.msra.mxu0 %v193
  %707 = vmatpush.bf16.msra.mxu0 %v191
  %708 = vmatmul.bf16.gmra.mxu0 %v698
  %v709 = vpop.f32.mrf.mxu0
  %v710 = vadd.f32 0.0, %v709
  %v711 = vpop.f32.mrf.mxu0
  %712 = vdwg.mxu0
  %713 = vmatpush.bf16.msra.mxu0 0
  %714 = vmatpush.bf16.msra.mxu0 0
  %715 = vmatpush.bf16.msra.mxu0 0
  %716 = vmatpush.bf16.msra.mxu0 0
  %717 = vmatpush.bf16.msra.mxu0 0
  %718 = vmatpush.bf16.msra.mxu0 0
  %719 = vmatpush.bf16.msra.mxu0 %v194
  %720 = vmatpush.bf16.msra.mxu0 %v192
  %721 = vmatmul.bf16.gmra.mxu0 %v698
  %v722 = vpop.f32.mrf.mxu0
  %v723 = vadd.f32 0.0, %v722
  %v724 = vpop.f32.mrf.mxu0
  %725 = vdwg.mxu0
  %v726 = vadd.f32 %v723, %v668
  %v727 = vadd.f32 %v726, %v143
  %v728 = vtanh.pop %v727
  %v729 = vmul.f32 %v728, %v147
  %v730 = vadd.f32 %v729, %v151
  %v731 = vmul.f32 %v730, %v644
  %733 = vrot.lane.b32.xlu0 %v730, 64
  %v734 = vpop.permute.xlu0 %733
  %v736 = vmul.f32 %v730, %v734
  %738 = vrot.lane.b32.xlu0 %v736, 32
  %v739 = vpop.permute.xlu0 %738
  %v741 = vadd.f32 %v731, %v739
  %v742 = vtanh.pop %v741
  %744 = vrot.lane.b32.xlu0 %v742, 64
  %v745 = vpop.permute.xlu0 %744
  %v747 = vmul.f32 %v730, %v745
  %v748 = vpack.c.bf16 %v747, %v747
  %750 = vrot.lane.b32.xlu0 %v748, 32
  %v751 = vpop.permute.xlu0 %750
  %v753 = vsel %vm199, %v751, 0
  %755 = vmatpush.bf16.msra.mxu0 0
  %756 = vmatpush.bf16.msra.mxu0 0
  %757 = vmatpush.bf16.msra.mxu0 0
  %758 = vmatpush.bf16.msra.mxu0 0
  %759 = vmatpush.bf16.msra.mxu0 0
  %760 = vmatpush.bf16.msra.mxu0 0
  %761 = vmatpush.bf16.msra.mxu0 %v264
  %762 = vmatpush.bf16.msra.mxu0 %v263
  %763 = vmatmul.bf16.gmra.mxu0 %v753
  %v764 = vpop.f32.mrf.mxu0
  %v765 = vadd.f32 0.0, %v764
  %v766 = vpop.f32.mrf.mxu0
  %767 = vdwg.mxu0
  %v768 = vld [vmem:[#allocation2 + $0x30] sm:$0xff]
  %v769 = vadd.f32 %v768, %v710
  %v770 = vtanh.pop %v769
  %v771 = vmul.f32 %v770, %v147
  %v772 = vadd.f32 %v771, %v151
  %v773 = vmul.f32 %v772, %v686
  %775 = vrot.lane.b32.xlu0 %v772, 64
  %v776 = vpop.permute.xlu0 %775
  %v778 = vmul.f32 %v772, %v776
  %780 = vrot.lane.b32.xlu0 %v778, 32
  %v781 = vpop.permute.xlu0 %780
  %v783 = vadd.f32 %v773, %v781
  %v784 = vtanh.pop %v783
  %786 = vrot.lane.b32.xlu0 %v784, 64
  %v787 = vpop.permute.xlu0 %786
  %v789 = vmul.f32 %v772, %v787
  %v790 = vpack.c.bf16 %v789, %v789
  %792 = vrot.lane.b32.xlu0 %v790, 32
  %v793 = vpop.permute.xlu0 %792
  %v795 = vsel %vm199, %v793, 0
  %797 = vmatpush.bf16.msra.mxu0 0
  %798 = vmatpush.bf16.msra.mxu0 0
  %799 = vmatpush.bf16.msra.mxu0 0
  %800 = vmatpush.bf16.msra.mxu0 0
  %801 = vmatpush.bf16.msra.mxu0 0
  %802 = vmatpush.bf16.msra.mxu0 0
  %803 = vmatpush.bf16.msra.mxu0 %v193
  %804 = vmatpush.bf16.msra.mxu0 %v191
  %805 = vmatmul.bf16.gmra.mxu0 %v795
  %v806 = vpop.f32.mrf.mxu0
  %v807 = vadd.f32 0.0, %v806
  %v808 = vpop.f32.mrf.mxu0
  %809 = vdwg.mxu0
  %810 = vmatpush.bf16.msra.mxu0 0
  %811 = vmatpush.bf16.msra.mxu0 0
  %812 = vmatpush.bf16.msra.mxu0 0
  %813 = vmatpush.bf16.msra.mxu0 0
  %814 = vmatpush.bf16.msra.mxu0 0
  %815 = vmatpush.bf16.msra.mxu0 0
  %816 = vmatpush.bf16.msra.mxu0 %v194
  %817 = vmatpush.bf16.msra.mxu0 %v192
  %818 = vmatmul.bf16.gmra.mxu0 %v795
  %v819 = vpop.f32.mrf.mxu0
  %v820 = vadd.f32 0.0, %v819
  %v821 = vpop.f32.mrf.mxu0
  %822 = vdwg.mxu0
  %v823 = vadd.f32 %v820, %v765
  %v824 = vadd.f32 %v823, %v143
  %v825 = vtanh.pop %v824
  %v826 = vmul.f32 %v825, %v147
  %v827 = vadd.f32 %v826, %v151
  %v828 = vmul.f32 %v827, %v741
  %830 = vrot.lane.b32.xlu0 %v827, 64
  %v831 = vpop.permute.xlu0 %830
  %v833 = vmul.f32 %v827, %v831
  %835 = vrot.lane.b32.xlu0 %v833, 32
  %v836 = vpop.permute.xlu0 %835
  %v838 = vadd.f32 %v828, %v836
  %v839 = vtanh.pop %v838
  %841 = vrot.lane.b32.xlu0 %v839, 64
  %v842 = vpop.permute.xlu0 %841
  %v844 = vmul.f32 %v827, %v842
  %v845 = vpack.c.bf16 %v844, %v844
  %847 = vrot.lane.b32.xlu0 %v845, 32
  %v848 = vpop.permute.xlu0 %847
  %v850 = vsel %vm199, %v848, 0
  %852 = vmatpush.bf16.msra.mxu0 0
  %853 = vmatpush.bf16.msra.mxu0 0
  %854 = vmatpush.bf16.msra.mxu0 0
  %855 = vmatpush.bf16.msra.mxu0 0
  %856 = vmatpush.bf16.msra.mxu0 0
  %857 = vmatpush.bf16.msra.mxu0 0
  %858 = vmatpush.bf16.msra.mxu0 %v264
  %859 = vmatpush.bf16.msra.mxu0 %v263
  %860 = vmatmul.bf16.gmra.mxu0 %v850
  %v861 = vpop.f32.mrf.mxu0
  %v862 = vadd.f32 0.0, %v861
  %v863 = vpop.f32.mrf.mxu0
  %864 = vdwg.mxu0
  %v865 = vld [vmem:[#allocation2 + $0x38] sm:$0xff]
  %v866 = vadd.f32 %v865, %v807
  %v867 = vtanh.pop %v866
  %v868 = vmul.f32 %v867, %v147
  %v869 = vadd.f32 %v868, %v151
  %v870 = vmul.f32 %v869, %v783
  %872 = vrot.lane.b32.xlu0 %v869, 64
  %v873 = vpop.permute.xlu0 %872
  %v875 = vmul.f32 %v869, %v873
  %877 = vrot.lane.b32.xlu0 %v875, 32
  %v878 = vpop.permute.xlu0 %877
  %v880 = vadd.f32 %v870, %v878
  %v881 = vtanh.pop %v880
  %883 = vrot.lane.b32.xlu0 %v881, 64
  %v884 = vpop.permute.xlu0 %883
  %v886 = vmul.f32 %v869, %v884
  %v887 = vpack.c.bf16 %v886, %v886
  %889 = vrot.lane.b32.xlu0 %v887, 32
  %v890 = vpop.permute.xlu0 %889
  %v892 = vsel %vm199, %v890, 0
  %894 = vmatpush.bf16.msra.mxu0 0
  %895 = vmatpush.bf16.msra.mxu0 0
  %896 = vmatpush.bf16.msra.mxu0 0
  %897 = vmatpush.bf16.msra.mxu0 0
  %898 = vmatpush.bf16.msra.mxu0 0
  %899 = vmatpush.bf16.msra.mxu0 0
  %900 = vmatpush.bf16.msra.mxu0 %v194
  %901 = vmatpush.bf16.msra.mxu0 %v192
  %902 = vmatmul.bf16.gmra.mxu0 %v892
  %v903 = vpop.f32.mrf.mxu0
  %v904 = vadd.f32 0.0, %v903
  %v905 = vpop.f32.mrf.mxu0
  %906 = vdwg.mxu0
  %v907 = vadd.f32 %v904, %v862
  %v908 = vadd.f32 %v907, %v143
  %v909 = vtanh.pop %v908
  %v910 = vmul.f32 %v909, %v147
  %v911 = vadd.f32 %v910, %v151
  %v912 = vmul.f32 %v911, %v838
  %914 = vrot.lane.b32.xlu0 %v911, 64
  %v915 = vpop.permute.xlu0 %914
  %v917 = vmul.f32 %v911, %v915
  %919 = vrot.lane.b32.xlu0 %v917, 32
  %v920 = vpop.permute.xlu0 %919
  %v922 = vadd.f32 %v912, %v920
  %v923 = vtanh.pop %v922
  %925 = vrot.lane.b32.xlu0 %v923, 64
  %v926 = vpop.permute.xlu0 %925
  %v928 = vmul.f32 %v911, %v926
  %930 = vrot.lane.b32.xlu0 %v928, 32
  %v931 = vpop.permute.xlu0 %930
  %v933 = vsel %vm199, %v931, 0.0
  %934 = vadd.xlane.f32.xlu0 %v933
  %v935 = vpop.xlane.xlu0 %934
  %v936 = vrcp.pop 32.0
  %v937 = vmul.f32 32.0, %v936
  %v938 = vsub.f32 1.0, %v937
  %v939 = vmul.f32 %v936, %v938
  %v940 = vadd.f32 %v936, %v939
  %vm941 = vweird.f32 %v936
  %v942 = vsel %vm941, %v936, %v940
  %v943 = vmul.f32 %v935, %v942
  %v944 = vmul.f32 %v928, %v928
  %946 = vrot.lane.b32.xlu0 %v944, 32
  %v947 = vpop.permute.xlu0 %946
  %v949 = vsel %vm199, %v947, 0.0
  %950 = vadd.xlane.f32.xlu0 %v949
  %v951 = vpop.xlane.xlu0 %950
  %v952 = vmul.f32 %v951, %v942
  %v953 = vmul.f32 %v943, %v943
  %v954 = vsub.f32 %v952, %v953
  %v955 = vmax.f32 %v954, 0.0
  %v956 = vsub.f32 %v928, %v943
  %v957 = vadd.f32 %v955, 1e-05
  %v958 = vrsqrt.pop %v957
  %v959 = vmul.f32 %v958, %v957
  %v960 = vmul.f32 %v959, %v958
  %v961 = vmul.f32 0.5, %v960
  %v962 = vsub.f32 1.5, %v961
  %v963 = vmul.f32 %v958, %v962
  %vm964 = vweird.f32 %v957
  %vm965 = vweird.f32 %v958
  %vm966 = vmor %vm964, %vm965
  %v967 = vsel %vm966, %v958, %v963
  %v968 = vmul.f32 %v956, %v967
  %v969 = vld [vmem:[%s8] sm:$0x1]
  %v971 = vperm.slane %v969, 0
  %972 = vrot.lane.b32.xlu0 %v971, 96
  %v973 = vpop.permute.xlu0 %972
  %v975 = vmul.f32 %v968, %v973
  %v976 = vld [vmem:[%s9] sm:$0x1]
  %v978 = vperm.slane %v976, 0
  %979 = vrot.lane.b32.xlu0 %v978, 96
  %v980 = vpop.permute.xlu0 %979
  %v982 = vadd.f32 %v975, %v980
  %v983 = vld [vmem:[%s10] sm:$0xff]
  %v984 = vld [vmem:[%s10 + $0x8] sm:$0xff]
  %v985 = vld [vmem:[%s10 + $0x10] sm:$0xff]
  %v986 = vld [vmem:[%s10 + $0x18] sm:$0xff]
  %v987 = vld [vmem:[%s11] sm:$0x1]
  %v989 = vperm.slane %v987, 0
  %992 = vrot.lane.b32.xlu0 %v982, 32
  %v993 = vpop.permute.xlu0 %992
  %v994 = vsel %vm199, %v993, 0
  %996 = vmatpush.msra.mxu0 0.0
  %997 = vmatpush.msra.mxu0 0.0
  %998 = vmatpush.msra.mxu0 0.0
  %999 = vmatpush.msra.mxu0 0.0
  %1000 = vmatpush.msra.mxu0 0.0
  %1001 = vmatpush.msra.mxu0 0.0
  %1002 = vmatpush.msra.mxu0 0.0
  %1003 = vmatpush.msra.mxu0 0.0
  %1004 = vmatpush.msra.mxu0 0.0
  %1005 = vmatpush.msra.mxu0 0.0
  %1006 = vmatpush.msra.mxu0 0.0
  %1007 = vmatpush.msra.mxu0 0.0
  %1008 = vmatpush.msra.mxu0 %v986
  %1009 = vmatpush.msra.mxu0 %v985
  %1010 = vmatpush.msra.mxu0 %v984
  %1011 = vmatpush.msra.mxu0 %v983
  %1012 = vmatmul.f32.gmra.mxu0 %v994
  %v1013 = vpop.f32.mrf.mxu0
  %v1014 = vadd.f32 %v989, %v1013
  %1015 = vdwg.mxu0
  %1016 = vst [vmem:[%s12] sm:$0xff] %v1014
  // Predicated region
  $region50: #{regularized_lstm_forward.1} parent=0 // pred_check
    _
  $region51: #{regularized_lstm_forward.1} parent=0 // pred_check_branch
    %1018 = sbr.rel (0) target = $region53
  $region52: #{regularized_lstm_forward.1} parent=0 // pred_region
    _
  $region53: #{regularized_lstm_forward.1} parent=0 // pred_fallthru
    _
  // Predicated region
  $region54: #{regularized_lstm_forward.1} parent=0 // pred_check
    _
  $region55: #{regularized_lstm_forward.1} parent=0 // pred_check_branch
    %1020 = sbr.rel (0) target = $region57
  $region56: #{regularized_lstm_forward.1} parent=0 // pred_region
    _
  $region57: #{regularized_lstm_forward.1} parent=0 // pred_fallthru
    _

</llo_original>
